<compile_context>
chip_gen: v7x
topology: tpu7x:2x2x1
jax: 0.10.0
libtpu: 0.0.40
codegen_flags: <defaults>
</compile_context>

<pallas_src>
import numpy as np
import jax
import jax.numpy as jnp
from jax.experimental import pallas as pl
from jax.experimental.pallas import tpu as pltpu

EPS = 1e-5


# ---------------------------------------------------------------------------
# Kernels: one MXU matmul per (batch-tile, lane-block); everything else is
# cheap VPU work on the f32 accumulator.
# ---------------------------------------------------------------------------
def _stats_kernel(x_ref, b_ref, sum_ref, sq_ref):
    # Pass 1: conv output stays in VMEM; emit per-tile per-(w, c_out) sum and
    # sum-of-squares.  Zero-padded batch rows contribute exactly 0 (no bias).
    y = jnp.dot(x_ref[...], b_ref[...], preferred_element_type=jnp.float32)
    sum_ref[0] = jnp.sum(y, axis=0, keepdims=True)
    sq_ref[0] = jnp.sum(y * y, axis=0, keepdims=True)


def _apply_kernel(x_ref, b_ref, scale_ref, shift_ref, o_ref):
    # Pass 2: recompute conv in VMEM, fused per-channel affine + ReLU,
    # lane-dense f32 store (lanes = fused (w, c_out) axis).
    y = jnp.dot(x_ref[...], b_ref[...], preferred_element_type=jnp.float32)
    o_ref[...] = jnp.maximum(y * scale_ref[...] + shift_ref[...], 0.0)


# ---------------------------------------------------------------------------
# Host-side helpers (device-resident, jittable)
# ---------------------------------------------------------------------------
def _build_banded_weights(w, width):
    """w: (C_out, C_in, 3, 3) -> (3*(width+2)*C_in, width*C_out) in bf16.

    B[(kh, wp, ci), (wo, co)] = w[co, ci, kh, wp - wo] for 0 <= wp - wo <= 2,
    else 0, so one GEMM of the H-banded input rows against B performs the full
    3x3 conv (C_in contraction + W window + kh rows) and lands directly in the
    fused lane-dense (w, c_out) layout.  Built with jnp ops only (jittable,
    no host sync, no per-call H2D upload); the (wp, wo) index pattern is a tiny
    static numpy table.
    """
    c_out, c_in, kh_sz, kw_sz = w.shape
    taps = jnp.transpose(w.astype(jnp.float32), (2, 3, 1, 0))  # (kh, kw, Ci, Co)
    wp = np.arange(width + 2)[:, None]
    wo = np.arange(width)[None, :]
    kw = wp - wo                                               # (width+2, width)
    valid = jnp.asarray((kw >= 0) & (kw < kw_sz))
    band = taps[:, np.clip(kw, 0, kw_sz - 1)]                  # (kh, wp, wo, Ci, Co)
    band = jnp.where(valid[None, :, :, None, None], band, 0.0)
    band = jnp.transpose(band, (0, 1, 3, 2, 4))                # (kh, wp, Ci, wo, Co)
    return band.reshape(kh_sz * (width + 2) * c_in,
                        width * c_out).astype(jnp.bfloat16)


def _pick_batch_tile(n, h):
    """Batch-tile choice:
      * one tile when the whole batch is <= 512 GEMM rows (don't split a tiny M
        and double the ~0.35 us/step grid overhead);
      * otherwise ~64 images/tile, rounded so bt*h is a multiple of 256 (the
        v6e/v7x MXU systolic height; clean 128-row passes on v5e)."""
    if n * h <= 512:
        return n
    per = max(1, 256 // h)                 # images per 256 GEMM rows
    bt = min(64, n)
    bt = max(per, (bt // per) * per)
    return bt


def _pick_lane_block(wc):
    # Split the fused (w, c_out) lane axis into 1024-lane blocks only when it
    # is large (C_out >= 256): shrinks the live accumulator / output buffers
    # (important inside v7x's 64 MiB VMEM) and yields more tiles for megacore
    # sharding.  Otherwise keep the full lane width (always lane-dense).
    if wc > 1024 and wc % 1024 == 0:
        return 1024
    return wc


# ---------------------------------------------------------------------------
# Forward wrapper
# ---------------------------------------------------------------------------
def conv_block_forward(x, params, *, batch_tile=None, lane_block=None,
                       channels_last=False):
    """Pallas forward for ConvBlock(conv='2d'), training-mode (batch-stat) BN."""
    w, b_bias, gamma, beta = params
    del b_bias          # per-channel conv bias cancels exactly under train-mode BN
    if x.ndim == 3:                              # matches s.view(-1, 21, 8, 8)
        x = x.reshape(-1, 21, 8, 8)
    x = x.astype(jnp.float32)                    # matches s.float()
    n, c_in, h, wdt = x.shape
    c_out = w.shape[0]
    assert w.shape[1] == c_in
    kb = 3 * (wdt + 2) * c_in                    # GEMM K (3*10*21 = 630)
    wc = wdt * c_out                             # fused lane width (mult. of 128 for C_out>=16)

    bt = batch_tile if batch_tile is not None else _pick_batch_tile(n, h)
    n_tiles = pl.cdiv(n, bt)
    n_pad = n_tiles * bt
    lb = lane_block if lane_block is not None else _pick_lane_block(wc)
    assert wc % lb == 0 and (lb == wc or lb % 128 == 0)
    n_lane = wc // lb

    # Layout glue (one small pass over the 21-channel input): NHWC, spatial pad,
    # band over the kernel-row axis (3x input expansion -- tiny vs. the output
    # for C_out >= 64), flatten to GEMM rows, cast operands to bf16.
    x_nhwc = jnp.transpose(x, (0, 2, 3, 1))
    if n_pad != n:                               # zero images contribute exactly 0 to stats
        x_nhwc = jnp.pad(x_nhwc, ((0, n_pad - n), (0, 0), (0, 0), (0, 0)))
    x_sp = jnp.pad(x_nhwc, ((0, 0), (1, 1), (1, 1), (0, 0)))          # (n_pad, H+2, W+2, Ci)
    x_band = jnp.stack([x_sp[:, kh:kh + h] for kh in range(3)], axis=2)  # (n_pad, H, 3, W+2, Ci)
    x_rows = x_band.reshape(n_pad * h, kb).astype(jnp.bfloat16)       # (n_pad*H, 630) bf16

    bmat = _build_banded_weights(w, wdt)         # (kb, wc) bf16, device-built

    # Block specs: x block is constant along the inner lane axis j (no re-DMA);
    # the bf16 weight block is small and re-fetched per lane block only.
    x_spec = pl.BlockSpec((bt * h, kb), lambda i, j: (i, 0))
    w_spec = pl.BlockSpec((kb, lb), lambda i, j: (0, j))
    par = pltpu.CompilerParams(dimension_semantics=("parallel", "parallel"))

    # ---- pass 1: conv (stays in VMEM) + per-tile sum / sum-of-squares --------
    part_sum, part_sq = pl.pallas_call(
        _stats_kernel,
        out_shape=(jax.ShapeDtypeStruct((n_tiles, 1, wc), jnp.float32),
                   jax.ShapeDtypeStruct((n_tiles, 1, wc), jnp.float32)),
        grid=(n_tiles, n_lane),
        in_specs=[x_spec, w_spec],
        out_specs=[pl.BlockSpec((1, 1, lb), lambda i, j: (i, 0, j)),
                   pl.BlockSpec((1, 1, lb), lambda i, j: (i, 0, j))],
        compiler_params=par,
    )(x_rows, bmat)

    # ---- tiny per-channel reduction + fused BN scale/shift (f32) -------------
    m_true = float(n * h * wdt)                  # only real rows
    ch_sum = jnp.sum(part_sum, axis=(0, 1)).reshape(wdt, c_out).sum(axis=0)
    ch_sq = jnp.sum(part_sq, axis=(0, 1)).reshape(wdt, c_out).sum(axis=0)
    mean = ch_sum / m_true
    var = jnp.maximum(ch_sq / m_true - mean * mean, 0.0)   # biased var (PyTorch train BN)
    scale_c = gamma.astype(jnp.float32) * jax.lax.rsqrt(var + EPS)
    shift_c = beta.astype(jnp.float32) - mean * scale_c
    scale = jnp.tile(scale_c, wdt).reshape(1, wc)           # broadcast to (w, c) lanes
    shift = jnp.tile(shift_c, wdt).reshape(1, wc)

    # ---- pass 2: recompute conv, fused scale/shift + ReLU, lane-dense store --
    out_rows = pl.pallas_call(
        _apply_kernel,
        out_shape=jax.ShapeDtypeStruct((n_pad * h, wc), jnp.float32),
        grid=(n_tiles, n_lane),
        in_specs=[x_spec, w_spec,
                  pl.BlockSpec((1, lb), lambda i, j: (0, j)),
                  pl.BlockSpec((1, lb), lambda i, j: (0, j))],
        out_specs=pl.BlockSpec((bt * h, lb), lambda i, j: (i, j)),
        compiler_params=par,
    )(x_rows, bmat, scale, shift)

    # (n_pad*H, W*C_out) is byte-identical to NHWC.
    out_nhwc = out_rows.reshape(n_pad, h, wdt, c_out)[:n]
    if channels_last:
        return out_nhwc                          # skip the extra HBM transpose pass
    return jnp.transpose(out_nhwc, (0, 3, 1, 2))  # PyTorch-parity NCHW (wrapper glue)


# ---------------------------------------------------------------------------
# Pure-JAX reference (includes the conv bias; BN cancels it exactly).
# quantize=True rounds x and w to bf16 first (matches the kernel's operand
# precision while keeping f32 accumulation), to check the kernel math tightly.
# ---------------------------------------------------------------------------
def _reference(x, w, b, gamma, beta, *, quantize=False):
    if x.ndim == 3:
        x = x.reshape(-1, 21, 8, 8)
    x = x.astype(jnp.float32)
    w = w.astype(jnp.float32)
    if quantize:
        x = x.astype(jnp.bfloat16).astype(jnp.float32)
        w = w.astype(jnp.bfloat16).astype(jnp.float32)
    y = jax.lax.conv_general_dilated(
        x, w, window_strides=(1, 1), padding="SAME",
        dimension_numbers=("NCHW", "OIHW", "NCHW"),
        precision=jax.lax.Precision.HIGHEST) + b[None, :, None, None]
    mean = jnp.mean(y, axis=(0, 2, 3), keepdims=True)
    var = jnp.mean((y - mean) ** 2, axis=(0, 2, 3), keepdims=True)
    yn = (y - mean) * jax.lax.rsqrt(var + EPS)
    return jnp.maximum(yn * gamma[None, :, None, None] + beta[None, :, None, None], 0.0)


if __name__ == "__main__":
    size = 32                                   # module "size" (C_out); spec default is 256
    key = jax.random.PRNGKey(0)
    k1, k2, k3, k4, k5 = jax.random.split(key, 5)
    w = 0.1 * jax.random.normal(k1, (size, 21, 3, 3), jnp.float32)
    b = 0.1 * jax.random.normal(k2, (size,), jnp.float32)   # cancels under train-mode BN
    gamma = 1.0 + 0.1 * jax.random.normal(k3, (size,), jnp.float32)
    beta = 0.1 * jax.random.normal(k4, (size,), jnp.float32)
    x = jax.random.normal(k5, (8, 21, 8, 8), jnp.float32)   # NCHW

    fwd = jax.jit(conv_block_forward)           # whole forward is now jittable
    out = jax.block_until_ready(fwd(x, (w, b, gamma, beta)))
    assert out.shape == (8, size, 8, 8)
    assert bool(jnp.all(out >= 0.0))                        # ReLU output

    # Tight check of the kernel math: same bf16-rounded operands, f32 accumulation.
    ref_q = _reference(x, w, b, gamma, beta, quantize=True)
    err_q = float(jnp.max(jnp.abs(out - ref_q)))
    assert err_q < 2e-3, f"mismatch vs bf16-operand reference: {err_q}"

    # End-to-end sanity vs full-f32 reference (difference = bf16 operand rounding).
    ref = _reference(x, w, b, gamma, beta, quantize=False)
    err = float(jnp.max(jnp.abs(out - ref)))
    assert err < 3e-2, f"mismatch vs f32 reference: {err}"
    print("KERNEL_OK")
</pallas_src>

<mosaic_0001>
module attributes {stable_mosaic.version = 11 : i64} {
  func.func @_stats_kernel(%arg0: i32, %arg1: i32, %arg2: memref<64x630xbf16, #tpu.memory_space<vmem>>, %arg3: memref<630x256xbf16, #tpu.memory_space<vmem>>, %arg4: memref<1x1x256xf32, #tpu.memory_space<vmem>>, %arg5: memref<1x1x256xf32, #tpu.memory_space<vmem>>) attributes {dimension_semantics = [#tpu.dimension_semantics<parallel>, #tpu.dimension_semantics<parallel>], iteration_bounds = array<i64: 1, 1>, scalar_prefetch = 0 : i64, scratch_operands = 0 : i64, tpu.core_type = #tpu.core_type<tc>, window_params = [{transform_indices = @transform_0, window_bounds = array<i64: 64, 630>}, {transform_indices = @transform_1, window_bounds = array<i64: 630, 256>}, {transform_indices = @transform_2, window_bounds = array<i64: 1, 1, 256>}, {transform_indices = @transform_3, window_bounds = array<i64: 1, 1, 256>}]} {
    %c0 = arith.constant 0 : index
    %c0_0 = arith.constant 0 : index
    %0 = vector.load %arg2[%c0, %c0_0] : memref<64x630xbf16, #tpu.memory_space<vmem>>, vector<64x630xbf16>
    %c0_1 = arith.constant 0 : index
    %c0_2 = arith.constant 0 : index
    %1 = vector.load %arg3[%c0_1, %c0_2] : memref<630x256xbf16, #tpu.memory_space<vmem>>, vector<630x256xbf16>
    %cst = arith.constant dense<0.000000e+00> : vector<64x256xf32>
    %2 = tpu.matmul %0, %1, %cst {dimension_numbers = #tpu.dot_dimension_numbers<[1], [0], [0], [1], [0, 0, 1, 1], [], []>} : vector<64x630xbf16>, vector<630x256xbf16>, vector<64x256xf32> -> vector<64x256xf32>
    %cst_3 = arith.constant dense<0.000000e+00> : vector<256xf32>
    %3 = vector.multi_reduction <add>, %2, %cst_3 [0] : vector<64x256xf32> to vector<256xf32>
    %4 = vector.shape_cast %3 : vector<256xf32> to vector<1x256xf32>
    %c0_4 = arith.constant 0 : index
    %c0_5 = arith.constant 0 : index
    %c0_6 = arith.constant 0 : index
    %5 = vector.load %arg4[%c0_4, %c0_5, %c0_6] : memref<1x1x256xf32, #tpu.memory_space<vmem>>, vector<1x1x256xf32>
    %6 = vector.shape_cast %5 : vector<1x1x256xf32> to vector<1x256xf32>
    %7 = vector.shape_cast %4 : vector<1x256xf32> to vector<1x1x256xf32>
    tpu.vector_store %arg4[%c0_4, %c0_5, %c0_6], %7 {strides = array<i32>} : memref<1x1x256xf32, #tpu.memory_space<vmem>>, vector<1x1x256xf32>,
    %8 = arith.mulf %2, %2 : vector<64x256xf32>
    %cst_7 = arith.constant dense<0.000000e+00> : vector<256xf32>
    %9 = vector.multi_reduction <add>, %8, %cst_7 [0] : vector<64x256xf32> to vector<256xf32>
    %10 = vector.shape_cast %9 : vector<256xf32> to vector<1x256xf32>
    %c0_8 = arith.constant 0 : index
    %c0_9 = arith.constant 0 : index
    %c0_10 = arith.constant 0 : index
    %11 = vector.load %arg5[%c0_8, %c0_9, %c0_10] : memref<1x1x256xf32, #tpu.memory_space<vmem>>, vector<1x1x256xf32>
    %12 = vector.shape_cast %11 : vector<1x1x256xf32> to vector<1x256xf32>
    %13 = vector.shape_cast %10 : vector<1x256xf32> to vector<1x1x256xf32>
    tpu.vector_store %arg5[%c0_8, %c0_9, %c0_10], %13 {strides = array<i32>} : memref<1x1x256xf32, #tpu.memory_space<vmem>>, vector<1x1x256xf32>,
    return
  }
  func.func @transform_0(%arg0: i32, %arg1: i32) -> (i32, i32) {
    %c0_i32 = arith.constant 0 : i32
    %c0_i32_0 = arith.constant 0 : i32
    return %arg0, %c0_i32 : i32, i32
  }
  func.func @transform_1(%arg0: i32, %arg1: i32) -> (i32, i32) {
    %c0_i32 = arith.constant 0 : i32
    %c0_i32_0 = arith.constant 0 : i32
    return %c0_i32, %arg1 : i32, i32
  }
  func.func @transform_2(%arg0: i32, %arg1: i32) -> (i32, i32, i32) {
    %c0_i32 = arith.constant 0 : i32
    %c0_i32_0 = arith.constant 0 : i32
    return %arg0, %c0_i32, %arg1 : i32, i32, i32
  }
  func.func @transform_3(%arg0: i32, %arg1: i32) -> (i32, i32, i32) {
    %c0_i32 = arith.constant 0 : i32
    %c0_i32_0 = arith.constant 0 : i32
    return %arg0, %c0_i32, %arg1 : i32, i32, i32
  }
}

module attributes {stable_mosaic.version = 11 : i64} {
  func.func @_apply_kernel(%arg0: i32, %arg1: i32, %arg2: memref<64x630xbf16, #tpu.memory_space<vmem>>, %arg3: memref<630x256xbf16, #tpu.memory_space<vmem>>, %arg4: memref<1x256xf32, #tpu.memory_space<vmem>>, %arg5: memref<1x256xf32, #tpu.memory_space<vmem>>, %arg6: memref<64x256xf32, #tpu.memory_space<vmem>>) attributes {dimension_semantics = [#tpu.dimension_semantics<parallel>, #tpu.dimension_semantics<parallel>], iteration_bounds = array<i64: 1, 1>, scalar_prefetch = 0 : i64, scratch_operands = 0 : i64, tpu.core_type = #tpu.core_type<tc>, window_params = [{transform_indices = @transform_0, window_bounds = array<i64: 64, 630>}, {transform_indices = @transform_1, window_bounds = array<i64: 630, 256>}, {transform_indices = @transform_2, window_bounds = array<i64: 1, 256>}, {transform_indices = @transform_3, window_bounds = array<i64: 1, 256>}, {transform_indices = @transform_4, window_bounds = array<i64: 64, 256>}]} {
    %c0 = arith.constant 0 : index
    %c0_0 = arith.constant 0 : index
    %0 = vector.load %arg2[%c0, %c0_0] : memref<64x630xbf16, #tpu.memory_space<vmem>>, vector<64x630xbf16>
    %c0_1 = arith.constant 0 : index
    %c0_2 = arith.constant 0 : index
    %1 = vector.load %arg3[%c0_1, %c0_2] : memref<630x256xbf16, #tpu.memory_space<vmem>>, vector<630x256xbf16>
    %cst = arith.constant dense<0.000000e+00> : vector<64x256xf32>
    %2 = tpu.matmul %0, %1, %cst {dimension_numbers = #tpu.dot_dimension_numbers<[1], [0], [0], [1], [0, 0, 1, 1], [], []>} : vector<64x630xbf16>, vector<630x256xbf16>, vector<64x256xf32> -> vector<64x256xf32>
    %c0_3 = arith.constant 0 : index
    %c0_4 = arith.constant 0 : index
    %3 = vector.load %arg4[%c0_3, %c0_4] : memref<1x256xf32, #tpu.memory_space<vmem>>, vector<1x256xf32>
    %4 = vector.broadcast %3 : vector<1x256xf32> to vector<64x256xf32>
    %5 = arith.mulf %2, %4 : vector<64x256xf32>
    %c0_5 = arith.constant 0 : index
    %c0_6 = arith.constant 0 : index
    %6 = vector.load %arg5[%c0_5, %c0_6] : memref<1x256xf32, #tpu.memory_space<vmem>>, vector<1x256xf32>
    %7 = vector.broadcast %6 : vector<1x256xf32> to vector<64x256xf32>
    %8 = arith.addf %5, %7 : vector<64x256xf32>
    %cst_7 = arith.constant 0.000000e+00 : f32
    %9 = vector.broadcast %cst_7 : f32 to vector<64x256xf32>
    %10 = arith.maximumf %8, %9 : vector<64x256xf32>
    %c0_8 = arith.constant 0 : index
    %c0_9 = arith.constant 0 : index
    %11 = vector.load %arg6[%c0_8, %c0_9] : memref<64x256xf32, #tpu.memory_space<vmem>>, vector<64x256xf32>
    tpu.vector_store %arg6[%c0_8, %c0_9], %10 {strides = array<i32>} : memref<64x256xf32, #tpu.memory_space<vmem>>, vector<64x256xf32>,
    return
  }
  func.func @transform_0(%arg0: i32, %arg1: i32) -> (i32, i32) {
    %c0_i32 = arith.constant 0 : i32
    %c0_i32_0 = arith.constant 0 : i32
    return %arg0, %c0_i32 : i32, i32
  }
  func.func @transform_1(%arg0: i32, %arg1: i32) -> (i32, i32) {
    %c0_i32 = arith.constant 0 : i32
    %c0_i32_0 = arith.constant 0 : i32
    return %c0_i32, %arg1 : i32, i32
  }
  func.func @transform_2(%arg0: i32, %arg1: i32) -> (i32, i32) {
    %c0_i32 = arith.constant 0 : i32
    %c0_i32_0 = arith.constant 0 : i32
    return %c0_i32, %arg1 : i32, i32
  }
  func.func @transform_3(%arg0: i32, %arg1: i32) -> (i32, i32) {
    %c0_i32 = arith.constant 0 : i32
    %c0_i32_0 = arith.constant 0 : i32
    return %c0_i32, %arg1 : i32, i32
  }
  func.func @transform_4(%arg0: i32, %arg1: i32) -> (i32, i32) {
    %c0_i32 = arith.constant 0 : i32
    return %arg0, %arg1 : i32, i32
  }
}

</mosaic_0001>

<llo_original>
// kernel: tile.13
$region0: #{tile.13}
  #allocation0 [shape = 's32[1]{0}', space=sflag, size = 0x4, scoped, tag = 'scoped memory for tile.13']
  %s0 = inlined_call_operand.vmem [shape: f32[32], index: 0, kind: input, shape index: {}]
  %s1 = inlined_call_operand.vmem [shape: f32[8,32], index: 1, kind: output, shape index: {}]
  // Predicated region
  $region2: #{tile.13} parent=0 // pred_check
    _
  $region3: #{tile.13} parent=0 // pred_check_branch
    %3 = sbr.rel (0) target = $region5
  $region4: #{tile.13} parent=0 // pred_region
    _
  $region5: #{tile.13} parent=0 // pred_fallthru
    _
  %v4 = vld [vmem:[%s0] ss:$0 sm:$0xff]
  %5 = vst [vmem:[%s1] sm:$0xff] %v4

// kernel: tile.14
$region0: #{tile.14}
  %s0 = inlined_call_operand.vmem [shape: f32[8,32], index: 0, kind: input, shape index: {}]
  %s1 = inlined_call_operand.vmem [shape: f32[1,256], index: 1, kind: output, shape index: {}]
  $region1: #{tile.14} parent=0
    #allocation0 [shape = 'u8[8192]{0}', space=vmem, size = 0x2000, scoped, tag = 'scoped mem for output reshape']
    %s2 = smov 3
    %v3 = vld [vmem:[%s0] ss:$4 sm:%s2]
    %vm4 = vcmask 261120
    %5 = vst.msk [vmem:[#allocation0] ss:$8 sm:$0x3] %vm4, %v3
    %s6 = scalar_lea.vmem %s0, 3
    %s7 = smov 3
    %v8 = vld [vmem:[%s6] ss:$4 sm:%s7]
    %9 = vrot.lane.b32.xlu0 %v8, 96
    %v10 = vpop.permute.xlu0 %9
    %vm11 = vcmask 1048320
    %12 = vst.msk [vmem:[#allocation0] ss:$8 sm:$0x3] %vm11, %v10
    %s13 = scalar_lea.vmem %s0, 2
    %s14 = smov 3
    %v15 = vld [vmem:[%s13] ss:$4 sm:%s14]
    %16 = vrot.lane.b32.xlu0 %v15, 64
    %v17 = vpop.permute.xlu0 %16
    %vm18 = vcmask 785920
    %19 = vst.msk [vmem:[#allocation0] ss:$8 sm:$0x3] %vm18, %v17
    %s20 = scalar_lea.vmem %s0, 1
    %s21 = smov 3
    %v22 = vld [vmem:[%s20] ss:$4 sm:%s21]
    %23 = vrot.lane.b32.xlu0 %v22, 32
    %v24 = vpop.permute.xlu0 %23
    %vm25 = vcmask 523520
    %26 = vst.msk [vmem:[#allocation0] ss:$8 sm:$0x3] %vm25, %v24
    %s28 = sshllo.u32 0, 1
    %v30 = vld [vmem:[#allocation0] sm:%s28]
    %s31 = sshllo.u32 0, 1
    %32 = vst [vmem:[%s1] sm:%s31] %v30
    %s33 = scalar_lea.vmem [#allocation0], 8
    %v34 = vld [vmem:[%s33] sm:%s28]
    %s35 = sshllo.u32 0, 1
    %s36 = scalar_lea.vmem %s1, 1
    %37 = vst [vmem:[%s36] sm:%s35] %v34

// kernel: conv_block_forward.2
$region0: #{conv_block_forward.2}
  #allocation0 [shape = 'u32[]', space=smem, size = 0x4, offset = 0x4, fixed_abs, tag = 'smem constant byte address 0x4 - core index']
  #allocation1 [shape = 'u32[144,128]{1,0:T(1,128)}', space=vmem, size = 0x12000, scoped, tag = 'internal scratch']
  %s0 = inlined_call_operand.vmem [shape: bf16[64,630], index: 0, kind: input, shape index: {}]
  %s1 = inlined_call_operand.vmem [shape: bf16[630,256], index: 1, kind: input, shape index: {}]
  %s2 = inlined_call_operand.vmem [shape: f32[1,1,256], index: 2, kind: output, shape index: {0}]
  %s3 = inlined_call_operand.vmem [shape: f32[1,1,256], index: 3, kind: output, shape index: {1}]
  %4 = xla_tuple %s2, %s3
  %s5 = sld [smem:[#allocation0]]
  $region26: #{conv_block_forward.2} parent=0
    _
  %s7 = ssub.s32 1, %s5
  %s8 = scalar_select 0, %s7, %s5
  // Predicated region
  $region2: #{conv_block_forward.2} parent=0 // pred_check
    _
  $region3: #{conv_block_forward.2} parent=0 // pred_check_branch
    %10 = sbr.rel (0) target = $region5
  $region4: #{conv_block_forward.2} parent=0 // pred_region
    _
  $region5: #{conv_block_forward.2} parent=0 // pred_fallthru
    _
  // Predicated region
  $region6: #{conv_block_forward.2} parent=0 // pred_check
    _
  $region7: #{conv_block_forward.2} parent=0 // pred_check_branch
    %12 = sbr.rel (0) target = $region9
  $region8: #{conv_block_forward.2} parent=0 // pred_region
    _
  $region9: #{conv_block_forward.2} parent=0 // pred_fallthru
    _
  %v14 = vld [vmem:[%s0] sm:$0xff]
  %v15 = vld [vmem:[%s0 + $0x8] sm:$0xff]
  %v16 = vld [vmem:[%s0 + $0x10] sm:$0xf]
  %v17 = vld [vmem:[%s0 + $0x14] sm:$0xff]
  %v18 = vld [vmem:[%s0 + $0x1c] sm:$0xff]
  %v19 = vld [vmem:[%s0 + $0x24] sm:$0xf]
  %v20 = vld [vmem:[%s0 + $0x28] sm:$0xff]
  %v21 = vld [vmem:[%s0 + $0x30] sm:$0xff]
  %v22 = vld [vmem:[%s0 + $0x38] sm:$0xf]
  %v23 = vld [vmem:[%s0 + $0x3c] sm:$0xff]
  %v24 = vld [vmem:[%s0 + $0x44] sm:$0xff]
  %v25 = vld [vmem:[%s0 + $0x4c] sm:$0xf]
  %v26 = vld [vmem:[%s0 + $0x50] sm:$0xff]
  %v27 = vld [vmem:[%s0 + $0x58] sm:$0xff]
  %v28 = vld [vmem:[%s0 + $0x60] sm:$0xf]
  %v29 = vld [vmem:[%s0 + $0x64] sm:$0xff]
  %v30 = vld [vmem:[%s0 + $0x6c] sm:$0xff]
  %v31 = vld [vmem:[%s0 + $0x74] sm:$0xf]
  %v32 = vld [vmem:[%s0 + $0x78] sm:$0xff]
  %v33 = vld [vmem:[%s0 + $0x80] sm:$0xff]
  %v34 = vld [vmem:[%s0 + $0x88] sm:$0xf]
  %v35 = vld [vmem:[%s0 + $0x8c] sm:$0xff]
  %v36 = vld [vmem:[%s0 + $0x94] sm:$0xff]
  %v37 = vld [vmem:[%s0 + $0x9c] sm:$0xf]
  %v38 = vld [vmem:[%s1] sm:$0xff]
  %v39 = vld [vmem:[%s1 + $0x8] sm:$0xff]
  %v40 = vld [vmem:[%s1 + $0x10] sm:$0xff]
  %v41 = vld [vmem:[%s1 + $0x18] sm:$0xff]
  %v42 = vld [vmem:[%s1 + $0x20] sm:$0xff]
  %v43 = vld [vmem:[%s1 + $0x28] sm:$0xff]
  %v44 = vld [vmem:[%s1 + $0x30] sm:$0xff]
  %v45 = vld [vmem:[%s1 + $0x38] sm:$0xff]
  %v46 = vld [vmem:[%s1 + $0x40] sm:$0xff]
  %v47 = vld [vmem:[%s1 + $0x48] sm:$0xff]
  %v48 = vld [vmem:[%s1 + $0x50] sm:$0xff]
  %v49 = vld [vmem:[%s1 + $0x58] sm:$0xff]
  %v50 = vld [vmem:[%s1 + $0x60] sm:$0xff]
  %v51 = vld [vmem:[%s1 + $0x68] sm:$0xff]
  %v52 = vld [vmem:[%s1 + $0x70] sm:$0xff]
  %v53 = vld [vmem:[%s1 + $0x78] sm:$0xff]
  %v54 = vld [vmem:[%s1 + $0x80] sm:$0xff]
  %v55 = vld [vmem:[%s1 + $0x88] sm:$0xff]
  %v56 = vld [vmem:[%s1 + $0x90] sm:$0xff]
  %v57 = vld [vmem:[%s1 + $0x98] sm:$0xff]
  %v58 = vld [vmem:[%s1 + $0xa0] sm:$0xff]
  %v59 = vld [vmem:[%s1 + $0xa8] sm:$0xff]
  %v60 = vld [vmem:[%s1 + $0xb0] sm:$0xff]
  %v61 = vld [vmem:[%s1 + $0xb8] sm:$0xff]
  %v62 = vld [vmem:[%s1 + $0xc0] sm:$0xff]
  %v63 = vld [vmem:[%s1 + $0xc8] sm:$0xff]
  %v64 = vld [vmem:[%s1 + $0xd0] sm:$0xff]
  %v65 = vld [vmem:[%s1 + $0xd8] sm:$0xff]
  %v66 = vld [vmem:[%s1 + $0xe0] sm:$0xff]
  %v67 = vld [vmem:[%s1 + $0xe8] sm:$0xff]
  %v68 = vld [vmem:[%s1 + $0xf0] sm:$0xff]
  %v69 = vld [vmem:[%s1 + $0xf8] sm:$0xff]
  %v70 = vld [vmem:[%s1 + $0x100] sm:$0xff]
  %v71 = vld [vmem:[%s1 + $0x108] sm:$0xff]
  %v72 = vld [vmem:[%s1 + $0x110] sm:$0xff]
  %v73 = vld [vmem:[%s1 + $0x118] sm:$0xff]
  %v74 = vld [vmem:[%s1 + $0x120] sm:$0xff]
  %v75 = vld [vmem:[%s1 + $0x128] sm:$0xff]
  %v76 = vld [vmem:[%s1 + $0x130] sm:$0xff]
  %v77 = vld [vmem:[%s1 + $0x138] sm:$0xff]
  %v78 = vld [vmem:[%s1 + $0x140] sm:$0xff]
  %v79 = vld [vmem:[%s1 + $0x148] sm:$0xff]
  %v80 = vld [vmem:[%s1 + $0x150] sm:$0xff]
  %v81 = vld [vmem:[%s1 + $0x158] sm:$0xff]
  %v82 = vld [vmem:[%s1 + $0x160] sm:$0xff]
  %v83 = vld [vmem:[%s1 + $0x168] sm:$0xff]
  %v84 = vld [vmem:[%s1 + $0x170] sm:$0xff]
  %v85 = vld [vmem:[%s1 + $0x178] sm:$0xff]
  %v86 = vld [vmem:[%s1 + $0x180] sm:$0xff]
  %v87 = vld [vmem:[%s1 + $0x188] sm:$0xff]
  %v88 = vld [vmem:[%s1 + $0x190] sm:$0xff]
  %v89 = vld [vmem:[%s1 + $0x198] sm:$0xff]
  %v90 = vld [vmem:[%s1 + $0x1a0] sm:$0xff]
  %v91 = vld [vmem:[%s1 + $0x1a8] sm:$0xff]
  %v92 = vld [vmem:[%s1 + $0x1b0] sm:$0xff]
  %v93 = vld [vmem:[%s1 + $0x1b8] sm:$0xff]
  %v94 = vld [vmem:[%s1 + $0x1c0] sm:$0xff]
  %v95 = vld [vmem:[%s1 + $0x1c8] sm:$0xff]
  %v96 = vld [vmem:[%s1 + $0x1d0] sm:$0xff]
  %v97 = vld [vmem:[%s1 + $0x1d8] sm:$0xff]
  %v98 = vld [vmem:[%s1 + $0x1e0] sm:$0xff]
  %v99 = vld [vmem:[%s1 + $0x1e8] sm:$0xff]
  %v100 = vld [vmem:[%s1 + $0x1f0] sm:$0xff]
  %v101 = vld [vmem:[%s1 + $0x1f8] sm:$0xff]
  %v102 = vld [vmem:[%s1 + $0x200] sm:$0xff]
  %v103 = vld [vmem:[%s1 + $0x208] sm:$0xff]
  %v104 = vld [vmem:[%s1 + $0x210] sm:$0xff]
  %v105 = vld [vmem:[%s1 + $0x218] sm:$0xff]
  %v106 = vld [vmem:[%s1 + $0x220] sm:$0xff]
  %v107 = vld [vmem:[%s1 + $0x228] sm:$0xff]
  %v108 = vld [vmem:[%s1 + $0x230] sm:$0xff]
  %v109 = vld [vmem:[%s1 + $0x238] sm:$0xff]
  %v110 = vld [vmem:[%s1 + $0x240] sm:$0xff]
  %v111 = vld [vmem:[%s1 + $0x248] sm:$0xff]
  %v112 = vld [vmem:[%s1 + $0x250] sm:$0xff]
  %v113 = vld [vmem:[%s1 + $0x258] sm:$0xff]
  %v114 = vld [vmem:[%s1 + $0x260] sm:$0xff]
  %v115 = vld [vmem:[%s1 + $0x268] sm:$0xff]
  %v116 = vld [vmem:[%s1 + $0x270] sm:$0x77]
  %v141 = vunpack.c.l.b16 %v14
  %v142 = vunpack.c.h.b16 %v14
  %v143 = vunpack.c.l.b16 %v15
  %v144 = vunpack.c.h.b16 %v15
  %v145 = vunpack.c.l.b16 %v16
  %v146 = vunpack.c.l.b16 %v17
  %v147 = vunpack.c.h.b16 %v17
  %v148 = vunpack.c.l.b16 %v18
  %v149 = vunpack.c.h.b16 %v18
  %v150 = vunpack.c.l.b16 %v19
  %v151 = vunpack.c.l.b16 %v20
  %v152 = vunpack.c.h.b16 %v20
  %v153 = vunpack.c.l.b16 %v21
  %v154 = vunpack.c.h.b16 %v21
  %v155 = vunpack.c.l.b16 %v22
  %v156 = vunpack.c.l.b16 %v23
  %v157 = vunpack.c.h.b16 %v23
  %v158 = vunpack.c.l.b16 %v24
  %v159 = vunpack.c.h.b16 %v24
  %v160 = vunpack.c.l.b16 %v25
  %v161 = vunpack.c.l.b16 %v26
  %v162 = vunpack.c.h.b16 %v26
  %v163 = vunpack.c.l.b16 %v27
  %v164 = vunpack.c.h.b16 %v27
  %v165 = vunpack.c.l.b16 %v28
  %v166 = vunpack.c.l.b16 %v29
  %v167 = vunpack.c.h.b16 %v29
  %v168 = vunpack.c.l.b16 %v30
  %v169 = vunpack.c.h.b16 %v30
  %v170 = vunpack.c.l.b16 %v31
  %v171 = vunpack.c.l.b16 %v32
  %v172 = vunpack.c.h.b16 %v32
  %v173 = vunpack.c.l.b16 %v33
  %v174 = vunpack.c.h.b16 %v33
  %v175 = vunpack.c.l.b16 %v34
  %v176 = vunpack.c.l.b16 %v35
  %v177 = vunpack.c.h.b16 %v35
  %v178 = vunpack.c.l.b16 %v36
  %v179 = vunpack.c.h.b16 %v36
  %v180 = vunpack.c.l.b16 %v37
  %v181 = vpack.c.b16 %v146, %v141
  %v182 = vpack.c.b16 %v147, %v142
  %v183 = vpack.c.b16 %v148, %v143
  %v184 = vpack.c.b16 %v149, %v144
  %v185 = vpack.c.b16 %v150, %v145
  %v186 = vpack.c.b16 %v156, %v151
  %v187 = vpack.c.b16 %v157, %v152
  %v188 = vpack.c.b16 %v158, %v153
  %v189 = vpack.c.b16 %v159, %v154
  %v190 = vpack.c.b16 %v160, %v155
  %v191 = vpack.c.b16 %v166, %v161
  %v192 = vpack.c.b16 %v167, %v162
  %v193 = vpack.c.b16 %v168, %v163
  %v194 = vpack.c.b16 %v169, %v164
  %v195 = vpack.c.b16 %v170, %v165
  %v196 = vpack.c.b16 %v176, %v171
  %v197 = vpack.c.b16 %v177, %v172
  %v198 = vpack.c.b16 %v178, %v173
  %v199 = vpack.c.b16 %v179, %v174
  %v200 = vpack.c.b16 %v180, %v175
  %v296 = vunpack.c.l.b16 %v38
  %v297 = vunpack.c.h.b16 %v38
  %v298 = vunpack.c.l.b16 %v39
  %v299 = vunpack.c.h.b16 %v39
  %v300 = vunpack.c.l.b16 %v40
  %v301 = vunpack.c.h.b16 %v40
  %v302 = vunpack.c.l.b16 %v41
  %v303 = vunpack.c.h.b16 %v41
  %v304 = vunpack.c.l.b16 %v42
  %v305 = vunpack.c.h.b16 %v42
  %v306 = vunpack.c.l.b16 %v43
  %v307 = vunpack.c.h.b16 %v43
  %v308 = vunpack.c.l.b16 %v44
  %v309 = vunpack.c.h.b16 %v44
  %v310 = vunpack.c.l.b16 %v45
  %v311 = vunpack.c.h.b16 %v45
  %v312 = vunpack.c.l.b16 %v46
  %v313 = vunpack.c.h.b16 %v46
  %v314 = vunpack.c.l.b16 %v47
  %v315 = vunpack.c.h.b16 %v47
  %v316 = vunpack.c.l.b16 %v48
  %v317 = vunpack.c.h.b16 %v48
  %v318 = vunpack.c.l.b16 %v49
  %v319 = vunpack.c.h.b16 %v49
  %v320 = vunpack.c.l.b16 %v50
  %v321 = vunpack.c.h.b16 %v50
  %v322 = vunpack.c.l.b16 %v51
  %v323 = vunpack.c.h.b16 %v51
  %v324 = vunpack.c.l.b16 %v52
  %v325 = vunpack.c.h.b16 %v52
  %v326 = vunpack.c.l.b16 %v53
  %v327 = vunpack.c.h.b16 %v53
  %v328 = vunpack.c.l.b16 %v54
  %v329 = vunpack.c.h.b16 %v54
  %v330 = vunpack.c.l.b16 %v55
  %v331 = vunpack.c.h.b16 %v55
  %v332 = vunpack.c.l.b16 %v56
  %v333 = vunpack.c.h.b16 %v56
  %v334 = vunpack.c.l.b16 %v57
  %v335 = vunpack.c.h.b16 %v57
  %v336 = vunpack.c.l.b16 %v58
  %v337 = vunpack.c.h.b16 %v58
  %v338 = vunpack.c.l.b16 %v59
  %v339 = vunpack.c.h.b16 %v59
  %v340 = vunpack.c.l.b16 %v60
  %v341 = vunpack.c.h.b16 %v60
  %v342 = vunpack.c.l.b16 %v61
  %v343 = vunpack.c.h.b16 %v61
  %v344 = vunpack.c.l.b16 %v62
  %v345 = vunpack.c.h.b16 %v62
  %v346 = vunpack.c.l.b16 %v63
  %v347 = vunpack.c.h.b16 %v63
  %v348 = vunpack.c.l.b16 %v64
  %v349 = vunpack.c.h.b16 %v64
  %v350 = vunpack.c.l.b16 %v65
  %v351 = vunpack.c.h.b16 %v65
  %v352 = vunpack.c.l.b16 %v66
  %v353 = vunpack.c.h.b16 %v66
  %v354 = vunpack.c.l.b16 %v67
  %v355 = vunpack.c.h.b16 %v67
  %v356 = vunpack.c.l.b16 %v68
  %v357 = vunpack.c.h.b16 %v68
  %v358 = vunpack.c.l.b16 %v69
  %v359 = vunpack.c.h.b16 %v69
  %v360 = vunpack.c.l.b16 %v70
  %v361 = vunpack.c.h.b16 %v70
  %v362 = vunpack.c.l.b16 %v71
  %v363 = vunpack.c.h.b16 %v71
  %v364 = vunpack.c.l.b16 %v72
  %v365 = vunpack.c.h.b16 %v72
  %v366 = vunpack.c.l.b16 %v73
  %v367 = vunpack.c.h.b16 %v73
  %v368 = vunpack.c.l.b16 %v74
  %v369 = vunpack.c.h.b16 %v74
  %v370 = vunpack.c.l.b16 %v75
  %v371 = vunpack.c.h.b16 %v75
  %v372 = vunpack.c.l.b16 %v76
  %v373 = vunpack.c.h.b16 %v76
  %v374 = vunpack.c.l.b16 %v77
  %v375 = vunpack.c.h.b16 %v77
  %v376 = vunpack.c.l.b16 %v78
  %v377 = vunpack.c.h.b16 %v78
  %v378 = vunpack.c.l.b16 %v79
  %v379 = vunpack.c.h.b16 %v79
  %v380 = vunpack.c.l.b16 %v80
  %v381 = vunpack.c.h.b16 %v80
  %v382 = vunpack.c.l.b16 %v81
  %v383 = vunpack.c.h.b16 %v81
  %v384 = vunpack.c.l.b16 %v82
  %v385 = vunpack.c.h.b16 %v82
  %v386 = vunpack.c.l.b16 %v83
  %v387 = vunpack.c.h.b16 %v83
  %v388 = vunpack.c.l.b16 %v84
  %v389 = vunpack.c.h.b16 %v84
  %v390 = vunpack.c.l.b16 %v85
  %v391 = vunpack.c.h.b16 %v85
  %v392 = vunpack.c.l.b16 %v86
  %v393 = vunpack.c.h.b16 %v86
  %v394 = vunpack.c.l.b16 %v87
  %v395 = vunpack.c.h.b16 %v87
  %v396 = vunpack.c.l.b16 %v88
  %v397 = vunpack.c.h.b16 %v88
  %v398 = vunpack.c.l.b16 %v89
  %v399 = vunpack.c.h.b16 %v89
  %v400 = vunpack.c.l.b16 %v90
  %v401 = vunpack.c.h.b16 %v90
  %v402 = vunpack.c.l.b16 %v91
  %v403 = vunpack.c.h.b16 %v91
  %v404 = vunpack.c.l.b16 %v92
  %v405 = vunpack.c.h.b16 %v92
  %v406 = vunpack.c.l.b16 %v93
  %v407 = vunpack.c.h.b16 %v93
  %v408 = vunpack.c.l.b16 %v94
  %v409 = vunpack.c.h.b16 %v94
  %v410 = vunpack.c.l.b16 %v95
  %v411 = vunpack.c.h.b16 %v95
  %v412 = vunpack.c.l.b16 %v96
  %v413 = vunpack.c.h.b16 %v96
  %v414 = vunpack.c.l.b16 %v97
  %v415 = vunpack.c.h.b16 %v97
  %v416 = vunpack.c.l.b16 %v98
  %v417 = vunpack.c.h.b16 %v98
  %v418 = vunpack.c.l.b16 %v99
  %v419 = vunpack.c.h.b16 %v99
  %v420 = vunpack.c.l.b16 %v100
  %v421 = vunpack.c.h.b16 %v100
  %v422 = vunpack.c.l.b16 %v101
  %v423 = vunpack.c.h.b16 %v101
  %v424 = vunpack.c.l.b16 %v102
  %v425 = vunpack.c.h.b16 %v102
  %v426 = vunpack.c.l.b16 %v103
  %v427 = vunpack.c.h.b16 %v103
  %v428 = vunpack.c.l.b16 %v104
  %v429 = vunpack.c.h.b16 %v104
  %v430 = vunpack.c.l.b16 %v105
  %v431 = vunpack.c.h.b16 %v105
  %v432 = vunpack.c.l.b16 %v106
  %v433 = vunpack.c.h.b16 %v106
  %v434 = vunpack.c.l.b16 %v107
  %v435 = vunpack.c.h.b16 %v107
  %v436 = vunpack.c.l.b16 %v108
  %v437 = vunpack.c.h.b16 %v108
  %v438 = vunpack.c.l.b16 %v109
  %v439 = vunpack.c.h.b16 %v109
  %v440 = vunpack.c.l.b16 %v110
  %v441 = vunpack.c.h.b16 %v110
  %v442 = vunpack.c.l.b16 %v111
  %v443 = vunpack.c.h.b16 %v111
  %v444 = vunpack.c.l.b16 %v112
  %v445 = vunpack.c.h.b16 %v112
  %v446 = vunpack.c.l.b16 %v113
  %v447 = vunpack.c.h.b16 %v113
  %v448 = vunpack.c.l.b16 %v114
  %v449 = vunpack.c.h.b16 %v114
  %v450 = vunpack.c.l.b16 %v115
  %v451 = vunpack.c.h.b16 %v115
  %v452 = vunpack.c.l.b16 %v116
  %v453 = vunpack.c.h.b16 %v116
  %v454 = vpack.c.b16 %v298, %v296
  %v455 = vpack.c.b16 %v299, %v297
  %v456 = vpack.c.b16 %v302, %v300
  %v457 = vpack.c.b16 %v303, %v301
  %v458 = vpack.c.b16 %v306, %v304
  %v459 = vpack.c.b16 %v307, %v305
  %v460 = vpack.c.b16 %v310, %v308
  %v461 = vpack.c.b16 %v311, %v309
  %v462 = vpack.c.b16 %v314, %v312
  %v463 = vpack.c.b16 %v315, %v313
  %v464 = vpack.c.b16 %v318, %v316
  %v465 = vpack.c.b16 %v319, %v317
  %v466 = vpack.c.b16 %v322, %v320
  %v467 = vpack.c.b16 %v323, %v321
  %v468 = vpack.c.b16 %v326, %v324
  %v469 = vpack.c.b16 %v327, %v325
  %v470 = vpack.c.b16 %v330, %v328
  %v471 = vpack.c.b16 %v331, %v329
  %v472 = vpack.c.b16 %v334, %v332
  %v473 = vpack.c.b16 %v335, %v333
  %v474 = vpack.c.b16 %v338, %v336
  %v475 = vpack.c.b16 %v339, %v337
  %v476 = vpack.c.b16 %v342, %v340
  %v477 = vpack.c.b16 %v343, %v341
  %v478 = vpack.c.b16 %v346, %v344
  %v479 = vpack.c.b16 %v347, %v345
  %v480 = vpack.c.b16 %v350, %v348
  %v481 = vpack.c.b16 %v351, %v349
  %v482 = vpack.c.b16 %v354, %v352
  %v483 = vpack.c.b16 %v355, %v353
  %v484 = vpack.c.b16 %v358, %v356
  %v485 = vpack.c.b16 %v359, %v357
  %v486 = vpack.c.b16 %v362, %v360
  %v487 = vpack.c.b16 %v363, %v361
  %v488 = vpack.c.b16 %v366, %v364
  %v489 = vpack.c.b16 %v367, %v365
  %v490 = vpack.c.b16 %v370, %v368
  %v491 = vpack.c.b16 %v371, %v369
  %v492 = vpack.c.b16 %v374, %v372
  %v493 = vpack.c.b16 %v375, %v373
  %v494 = vpack.c.b16 %v378, %v376
  %v495 = vpack.c.b16 %v379, %v377
  %v496 = vpack.c.b16 %v382, %v380
  %v497 = vpack.c.b16 %v383, %v381
  %v498 = vpack.c.b16 %v386, %v384
  %v499 = vpack.c.b16 %v387, %v385
  %v500 = vpack.c.b16 %v390, %v388
  %v501 = vpack.c.b16 %v391, %v389
  %v502 = vpack.c.b16 %v394, %v392
  %v503 = vpack.c.b16 %v395, %v393
  %v504 = vpack.c.b16 %v398, %v396
  %v505 = vpack.c.b16 %v399, %v397
  %v506 = vpack.c.b16 %v402, %v400
  %v507 = vpack.c.b16 %v403, %v401
  %v508 = vpack.c.b16 %v406, %v404
  %v509 = vpack.c.b16 %v407, %v405
  %v510 = vpack.c.b16 %v410, %v408
  %v511 = vpack.c.b16 %v411, %v409
  %v512 = vpack.c.b16 %v414, %v412
  %v513 = vpack.c.b16 %v415, %v413
  %v514 = vpack.c.b16 %v418, %v416
  %v515 = vpack.c.b16 %v419, %v417
  %v516 = vpack.c.b16 %v422, %v420
  %v517 = vpack.c.b16 %v423, %v421
  %v518 = vpack.c.b16 %v426, %v424
  %v519 = vpack.c.b16 %v427, %v425
  %v520 = vpack.c.b16 %v430, %v428
  %v521 = vpack.c.b16 %v431, %v429
  %v522 = vpack.c.b16 %v434, %v432
  %v523 = vpack.c.b16 %v435, %v433
  %v524 = vpack.c.b16 %v438, %v436
  %v525 = vpack.c.b16 %v439, %v437
  %v526 = vpack.c.b16 %v442, %v440
  %v527 = vpack.c.b16 %v443, %v441
  %v528 = vpack.c.b16 %v446, %v444
  %v529 = vpack.c.b16 %v447, %v445
  %v530 = vpack.c.b16 %v450, %v448
  %v531 = vpack.c.b16 %v451, %v449
  %v532 = vpack.c.b16 %v452, %v452
  %v533 = vpack.c.b16 %v453, %v453
  %vm612 = vcmask 965632
  %v614 = vsel %vm612, %v185, 0
  %v617 = vsel %vm612, %v190, 0
  %v620 = vsel %vm612, %v195, 0
  %v623 = vsel %vm612, %v200, 0
  %vm625 = vcmask 1042432
  %v627 = vsel %vm625, %v532, 0
  %v630 = vsel %vm625, %v533, 0
  %632 = vmatprep.subr.bf16.mxu0 %v455
  %633 = vmatpush1.bf16.msra.mxu0 %v454
  %634 = vmatprep.subr.bf16.mxu0 %v457
  %635 = vmatpush1.bf16.msra.mxu0 %v456
  %636 = vmatprep.subr.bf16.mxu0 %v459
  %637 = vmatpush1.bf16.msra.mxu0 %v458
  %638 = vmatprep.subr.bf16.mxu0 %v461
  %639 = vmatpush1.bf16.msra.mxu0 %v460
  %640 = vmatprep.subr.bf16.mxu0 %v463
  %641 = vmatpush1.bf16.msra.mxu0 %v462
  %642 = vmatprep.subr.bf16.mxu0 %v465
  %643 = vmatpush1.bf16.msra.mxu0 %v464
  %644 = vmatprep.subr.bf16.mxu0 %v467
  %645 = vmatpush1.bf16.msra.mxu0 %v466
  %646 = vmatprep.subr.bf16.mxu0 %v469
  %647 = vmatpush1.bf16.msra.mxu0 %v468
  %648 = vmatprep.subr.bf16.mxu0 %v471
  %649 = vmatpush1.bf16.msra.mxu0 %v470
  %650 = vmatprep.subr.bf16.mxu0 %v473
  %651 = vmatpush1.bf16.msra.mxu0 %v472
  %652 = vmatprep.subr.bf16.mxu0 %v475
  %653 = vmatpush1.bf16.msra.mxu0 %v474
  %654 = vmatprep.subr.bf16.mxu0 %v477
  %655 = vmatpush1.bf16.msra.mxu0 %v476
  %656 = vmatprep.subr.bf16.mxu0 %v479
  %657 = vmatpush1.bf16.msra.mxu0 %v478
  %658 = vmatprep.subr.bf16.mxu0 %v481
  %659 = vmatpush1.bf16.msra.mxu0 %v480
  %660 = vmatprep.subr.bf16.mxu0 %v483
  %661 = vmatpush1.bf16.msra.mxu0 %v482
  %662 = vmatprep.subr.bf16.mxu0 %v485
  %663 = vmatpush1.bf16.msra.mxu0 %v484
  %664 = vmatprep.mubr.bf16.mxu0 %v182
  %665 = vmatmul.mubr.bf16.gmra.mrb[0].mxu0 %v181
  %v666 = vpop.f32.mrb[0].mxu0
  %v667 = vadd.f32 0.0, %v666
  %v668 = vpop.f32.mrb[0].mxu0
  %v669 = vadd.f32 0.0, %v668
  %v670 = vpop.f32.mrb[0].mxu0
  %v671 = vadd.f32 0.0, %v670
  %v672 = vpop.f32.mrb[0].mxu0
  %v673 = vadd.f32 0.0, %v672
  %674 = vmatprep.mubr.bf16.mxu0 %v187
  %675 = vmatmul.mubr.bf16.gmra.mrb[0].mxu0 %v186
  %v676 = vpop.f32.mrb[0].mxu0
  %v677 = vadd.f32 0.0, %v676
  %v678 = vpop.f32.mrb[0].mxu0
  %v679 = vadd.f32 0.0, %v678
  %v680 = vpop.f32.mrb[0].mxu0
  %v681 = vadd.f32 0.0, %v680
  %v682 = vpop.f32.mrb[0].mxu0
  %v683 = vadd.f32 0.0, %v682
  %684 = vmatprep.mubr.bf16.mxu0 %v192
  %685 = vmatmul.mubr.bf16.gmra.mrb[0].mxu0 %v191
  %v686 = vpop.f32.mrb[0].mxu0
  %v687 = vadd.f32 0.0, %v686
  %v688 = vpop.f32.mrb[0].mxu0
  %v689 = vadd.f32 0.0, %v688
  %v690 = vpop.f32.mrb[0].mxu0
  %v691 = vadd.f32 0.0, %v690
  %v692 = vpop.f32.mrb[0].mxu0
  %v693 = vadd.f32 0.0, %v692
  %694 = vmatprep.mubr.bf16.mxu0 %v197
  %695 = vmatmul.mubr.bf16.gmra.mrb[0].mxu0 %v196
  %v696 = vpop.f32.mrb[0].mxu0
  %v697 = vadd.f32 0.0, %v696
  %v698 = vpop.f32.mrb[0].mxu0
  %v699 = vadd.f32 0.0, %v698
  %v700 = vpop.f32.mrb[0].mxu0
  %v701 = vadd.f32 0.0, %v700
  %v702 = vpop.f32.mrb[0].mxu0
  %v703 = vadd.f32 0.0, %v702
  %704 = vdwg.mxu0
  %705 = vmatprep.subr.bf16.mxu0 %v487
  %706 = vmatpush1.bf16.msra.mxu0 %v486
  %707 = vmatprep.subr.bf16.mxu0 %v489
  %708 = vmatpush1.bf16.msra.mxu0 %v488
  %709 = vmatprep.subr.bf16.mxu0 %v491
  %710 = vmatpush1.bf16.msra.mxu0 %v490
  %711 = vmatprep.subr.bf16.mxu0 %v493
  %712 = vmatpush1.bf16.msra.mxu0 %v492
  %713 = vmatprep.subr.bf16.mxu0 %v495
  %714 = vmatpush1.bf16.msra.mxu0 %v494
  %715 = vmatprep.subr.bf16.mxu0 %v497
  %716 = vmatpush1.bf16.msra.mxu0 %v496
  %717 = vmatprep.subr.bf16.mxu0 %v499
  %718 = vmatpush1.bf16.msra.mxu0 %v498
  %719 = vmatprep.subr.bf16.mxu0 %v501
  %720 = vmatpush1.bf16.msra.mxu0 %v500
  %721 = vmatprep.subr.bf16.mxu0 %v503
  %722 = vmatpush1.bf16.msra.mxu0 %v502
  %723 = vmatprep.subr.bf16.mxu0 %v505
  %724 = vmatpush1.bf16.msra.mxu0 %v504
  %725 = vmatprep.subr.bf16.mxu0 %v507
  %726 = vmatpush1.bf16.msra.mxu0 %v506
  %727 = vmatprep.subr.bf16.mxu0 %v509
  %728 = vmatpush1.bf16.msra.mxu0 %v508
  %729 = vmatprep.subr.bf16.mxu0 %v511
  %730 = vmatpush1.bf16.msra.mxu0 %v510
  %731 = vmatprep.subr.bf16.mxu0 %v513
  %732 = vmatpush1.bf16.msra.mxu0 %v512
  %733 = vmatprep.subr.bf16.mxu0 %v515
  %734 = vmatpush1.bf16.msra.mxu0 %v514
  %735 = vmatprep.subr.bf16.mxu0 %v517
  %736 = vmatpush1.bf16.msra.mxu0 %v516
  %737 = vmatprep.mubr.bf16.mxu0 %v184
  %738 = vmatmul.mubr.bf16.gmra.mrb[0].mxu0 %v183
  %v739 = vpop.f32.mrb[0].mxu0
  %v740 = vadd.f32 %v667, %v739
  %v741 = vpop.f32.mrb[0].mxu0
  %v742 = vadd.f32 %v669, %v741
  %v743 = vpop.f32.mrb[0].mxu0
  %v744 = vadd.f32 %v671, %v743
  %v745 = vpop.f32.mrb[0].mxu0
  %v746 = vadd.f32 %v673, %v745
  %747 = vmatprep.mubr.bf16.mxu0 %v189
  %748 = vmatmul.mubr.bf16.gmra.mrb[0].mxu0 %v188
  %v749 = vpop.f32.mrb[0].mxu0
  %v750 = vadd.f32 %v677, %v749
  %v751 = vpop.f32.mrb[0].mxu0
  %v752 = vadd.f32 %v679, %v751
  %v753 = vpop.f32.mrb[0].mxu0
  %v754 = vadd.f32 %v681, %v753
  %v755 = vpop.f32.mrb[0].mxu0
  %v756 = vadd.f32 %v683, %v755
  %757 = vmatprep.mubr.bf16.mxu0 %v194
  %758 = vmatmul.mubr.bf16.gmra.mrb[0].mxu0 %v193
  %v759 = vpop.f32.mrb[0].mxu0
  %v760 = vadd.f32 %v687, %v759
  %v761 = vpop.f32.mrb[0].mxu0
  %v762 = vadd.f32 %v689, %v761
  %v763 = vpop.f32.mrb[0].mxu0
  %v764 = vadd.f32 %v691, %v763
  %v765 = vpop.f32.mrb[0].mxu0
  %v766 = vadd.f32 %v693, %v765
  %767 = vmatprep.mubr.bf16.mxu0 %v199
  %768 = vmatmul.mubr.bf16.gmra.mrb[0].mxu0 %v198
  %v769 = vpop.f32.mrb[0].mxu0
  %v770 = vadd.f32 %v697, %v769
  %v771 = vpop.f32.mrb[0].mxu0
  %v772 = vadd.f32 %v699, %v771
  %v773 = vpop.f32.mrb[0].mxu0
  %v774 = vadd.f32 %v701, %v773
  %v775 = vpop.f32.mrb[0].mxu0
  %v776 = vadd.f32 %v703, %v775
  %777 = vdwg.mxu0
  %778 = vmatprep.subr.bf16.mxu0 %v519
  %779 = vmatpush1.bf16.msra.mxu0 %v518
  %780 = vmatprep.subr.bf16.mxu0 %v521
  %781 = vmatpush1.bf16.msra.mxu0 %v520
  %782 = vmatprep.subr.bf16.mxu0 %v523
  %783 = vmatpush1.bf16.msra.mxu0 %v522
  %784 = vmatprep.subr.bf16.mxu0 %v525
  %785 = vmatpush1.bf16.msra.mxu0 %v524
  %786 = vmatprep.subr.bf16.mxu0 %v527
  %787 = vmatpush1.bf16.msra.mxu0 %v526
  %788 = vmatprep.subr.bf16.mxu0 %v529
  %789 = vmatpush1.bf16.msra.mxu0 %v528
  %790 = vmatprep.subr.bf16.mxu0 %v531
  %791 = vmatpush1.bf16.msra.mxu0 %v530
  %792 = vmatprep.subr.bf16.mxu0 %v630
  %793 = vmatpush1.bf16.msra.mxu0 %v627
  %794 = vmatprep.subr.bf16.mxu0 0
  %795 = vmatpush1.bf16.msra.mxu0 0
  %796 = vmatprep.subr.bf16.mxu0 0
  %797 = vmatpush1.bf16.msra.mxu0 0
  %798 = vmatprep.subr.bf16.mxu0 0
  %799 = vmatpush1.bf16.msra.mxu0 0
  %800 = vmatprep.subr.bf16.mxu0 0
  %801 = vmatpush1.bf16.msra.mxu0 0
  %802 = vmatprep.subr.bf16.mxu0 0
  %803 = vmatpush1.bf16.msra.mxu0 0
  %804 = vmatprep.subr.bf16.mxu0 0
  %805 = vmatpush1.bf16.msra.mxu0 0
  %806 = vmatprep.subr.bf16.mxu0 0
  %807 = vmatpush1.bf16.msra.mxu0 0
  %808 = vmatprep.subr.bf16.mxu0 0
  %809 = vmatpush1.bf16.msra.mxu0 0
  %810 = vmatprep.mubr.bf16.mxu0 0
  %811 = vmatmul.mubr.bf16.gmra.mrb[0].mxu0 %v614
  %v812 = vpop.f32.mrb[0].mxu0
  %v813 = vadd.f32 %v740, %v812
  %v814 = vpop.f32.mrb[0].mxu0
  %v815 = vadd.f32 %v742, %v814
  %v816 = vpop.f32.mrb[0].mxu0
  %v817 = vadd.f32 %v744, %v816
  %v818 = vpop.f32.mrb[0].mxu0
  %v819 = vadd.f32 %v746, %v818
  %820 = vmatprep.mubr.bf16.mxu0 0
  %821 = vmatmul.mubr.bf16.gmra.mrb[0].mxu0 %v617
  %v822 = vpop.f32.mrb[0].mxu0
  %v823 = vadd.f32 %v750, %v822
  %v824 = vpop.f32.mrb[0].mxu0
  %v825 = vadd.f32 %v752, %v824
  %v826 = vpop.f32.mrb[0].mxu0
  %v827 = vadd.f32 %v754, %v826
  %v828 = vpop.f32.mrb[0].mxu0
  %v829 = vadd.f32 %v756, %v828
  %830 = vmatprep.mubr.bf16.mxu0 0
  %831 = vmatmul.mubr.bf16.gmra.mrb[0].mxu0 %v620
  %v832 = vpop.f32.mrb[0].mxu0
  %v833 = vadd.f32 %v760, %v832
  %v834 = vpop.f32.mrb[0].mxu0
  %v835 = vadd.f32 %v762, %v834
  %v836 = vpop.f32.mrb[0].mxu0
  %v837 = vadd.f32 %v764, %v836
  %v838 = vpop.f32.mrb[0].mxu0
  %v839 = vadd.f32 %v766, %v838
  %840 = vmatprep.mubr.bf16.mxu0 0
  %841 = vmatmul.mubr.bf16.gmra.mrb[0].mxu0 %v623
  %v842 = vpop.f32.mrb[0].mxu0
  %v843 = vadd.f32 %v770, %v842
  %v844 = vpop.f32.mrb[0].mxu0
  %v845 = vadd.f32 %v772, %v844
  %v846 = vpop.f32.mrb[0].mxu0
  %v847 = vadd.f32 %v774, %v846
  %v848 = vpop.f32.mrb[0].mxu0
  %v849 = vadd.f32 %v776, %v848
  %850 = vdwg.mxu0
  %v851 = vadd.f32 %v813, %v817
  %v852 = vadd.f32 %v851, %v823
  %v853 = vadd.f32 %v852, %v827
  %v854 = vadd.f32 %v853, %v833
  %v855 = vadd.f32 %v854, %v837
  %v856 = vadd.f32 %v855, %v843
  %v857 = vadd.f32 %v856, %v847
  %v858 = vrot.slane %v857, 4
  %v859 = vadd.f32 %v857, %v858
  %v860 = vrot.slane %v859, 2
  %v861 = vadd.f32 %v859, %v860
  %v862 = vrot.slane %v861, 1
  %v863 = vadd.f32 %v861, %v862
  %v864 = vadd.f32 %v815, %v819
  %v865 = vadd.f32 %v864, %v825
  %v866 = vadd.f32 %v865, %v829
  %v867 = vadd.f32 %v866, %v835
  %v868 = vadd.f32 %v867, %v839
  %v869 = vadd.f32 %v868, %v845
  %v870 = vadd.f32 %v869, %v849
  %v871 = vrot.slane %v870, 4
  %v872 = vadd.f32 %v870, %v871
  %v873 = vrot.slane %v872, 2
  %v874 = vadd.f32 %v872, %v873
  %v875 = vrot.slane %v874, 1
  %v876 = vadd.f32 %v874, %v875
  %v879 = vcombine.low %v863, %v876
  %v881 = vunpack.c.l.s4 1966171168
  %v882 = vunpack.c.0.s8 %v881
  %v883 = vlaneseq
  %v884 = vshrl.u32 %v883, 7
  %v885 = vsub.s32 %v882, %v884
  %v886 = vrot.slane %v879, %v885
  %v888 = vunpack.c.l.s4 1966171168
  %v889 = vunpack.c.0.s8 %v888
  %v890 = vlaneseq
  %v891 = vshrl.u32 %v890, 7
  %v892 = vsub.s32 %v889, %v891
  %v893 = vrot.slane %v886, %v892
  %v895 = vlaneseq
  %vm896 = vcmp.ge.s32.totalorder %v895, 0
  %vm897 = vcmp.lt.s32.totalorder %v895, 256
  %vm898 = vmand %vm896, %vm897
  %899 = vst.msk [vmem:[%s2] sm:$0x3] %vm898, %v893
  %v900 = vmul.f32 %v813, %v813
  %v901 = vmul.f32 %v815, %v815
  %v902 = vmul.f32 %v817, %v817
  %v903 = vmul.f32 %v819, %v819
  %v904 = vmul.f32 %v823, %v823
  %v905 = vmul.f32 %v825, %v825
  %v906 = vmul.f32 %v827, %v827
  %v907 = vmul.f32 %v829, %v829
  %v908 = vmul.f32 %v833, %v833
  %v909 = vmul.f32 %v835, %v835
  %v910 = vmul.f32 %v837, %v837
  %v911 = vmul.f32 %v839, %v839
  %v912 = vmul.f32 %v843, %v843
  %v913 = vmul.f32 %v845, %v845
  %v914 = vmul.f32 %v847, %v847
  %v915 = vmul.f32 %v849, %v849
  %v916 = vadd.f32 %v900, %v902
  %v917 = vadd.f32 %v916, %v904
  %v918 = vadd.f32 %v917, %v906
  %v919 = vadd.f32 %v918, %v908
  %v920 = vadd.f32 %v919, %v910
  %v921 = vadd.f32 %v920, %v912
  %v922 = vadd.f32 %v921, %v914
  %v923 = vrot.slane %v922, 4
  %v924 = vadd.f32 %v922, %v923
  %v925 = vrot.slane %v924, 2
  %v926 = vadd.f32 %v924, %v925
  %v927 = vrot.slane %v926, 1
  %v928 = vadd.f32 %v926, %v927
  %v929 = vadd.f32 %v901, %v903
  %v930 = vadd.f32 %v929, %v905
  %v931 = vadd.f32 %v930, %v907
  %v932 = vadd.f32 %v931, %v909
  %v933 = vadd.f32 %v932, %v911
  %v934 = vadd.f32 %v933, %v913
  %v935 = vadd.f32 %v934, %v915
  %v936 = vrot.slane %v935, 4
  %v937 = vadd.f32 %v935, %v936
  %v938 = vrot.slane %v937, 2
  %v939 = vadd.f32 %v937, %v938
  %v940 = vrot.slane %v939, 1
  %v941 = vadd.f32 %v939, %v940
  %v944 = vcombine.low %v928, %v941
  %v946 = vunpack.c.l.s4 1966171168
  %v947 = vunpack.c.0.s8 %v946
  %v948 = vlaneseq
  %v949 = vshrl.u32 %v948, 7
  %v950 = vsub.s32 %v947, %v949
  %v951 = vrot.slane %v944, %v950
  %v953 = vunpack.c.l.s4 1966171168
  %v954 = vunpack.c.0.s8 %v953
  %v955 = vlaneseq
  %v956 = vshrl.u32 %v955, 7
  %v957 = vsub.s32 %v954, %v956
  %v958 = vrot.slane %v951, %v957
  %960 = vst.msk [vmem:[%s3] sm:$0x3] %vm898, %v958
  // Predicated region
  $region10: #{conv_block_forward.2} parent=0 // pred_check
    _
  $region11: #{conv_block_forward.2} parent=0 // pred_check_branch
    %962 = sbr.rel (0) target = $region13
  $region12: #{conv_block_forward.2} parent=0 // pred_region
    _
  $region13: #{conv_block_forward.2} parent=0 // pred_fallthru
    _
  // Predicated region
  $region14: #{conv_block_forward.2} parent=0 // pred_check
    _
  $region15: #{conv_block_forward.2} parent=0 // pred_check_branch
    %964 = sbr.rel (0) target = $region17
  $region16: #{conv_block_forward.2} parent=0 // pred_region
    _
  $region17: #{conv_block_forward.2} parent=0 // pred_fallthru
    _
  // Predicated region
  $region18: #{conv_block_forward.2} parent=0 // pred_check
    _
  $region19: #{conv_block_forward.2} parent=0 // pred_check_branch
    %966 = sbr.rel (0) target = $region21
  $region20: #{conv_block_forward.2} parent=0 // pred_region
    _
  $region21: #{conv_block_forward.2} parent=0 // pred_fallthru
    _
  // Predicated region
  $region22: #{conv_block_forward.2} parent=0 // pred_check
    _
  $region23: #{conv_block_forward.2} parent=0 // pred_check_branch
    %968 = sbr.rel (0) target = $region25
  $region24: #{conv_block_forward.2} parent=0 // pred_region
    _
  $region25: #{conv_block_forward.2} parent=0 // pred_fallthru
    _

// kernel: conv_block_forward.3
$region0: #{conv_block_forward.3}
  #allocation0 [shape = 'u32[]', space=smem, size = 0x4, offset = 0x4, fixed_abs, tag = 'smem constant byte address 0x4 - core index']
  #allocation1 [shape = 'u32[144,128]{1,0:T(1,128)}', space=vmem, size = 0x12000, scoped, tag = 'internal scratch']
  %s0 = inlined_call_operand.vmem [shape: bf16[64,630], index: 0, kind: input, shape index: {}]
  %s1 = inlined_call_operand.vmem [shape: bf16[630,256], index: 1, kind: input, shape index: {}]
  %s2 = inlined_call_operand.vmem [shape: f32[1,256], index: 2, kind: input, shape index: {}]
  %s3 = inlined_call_operand.vmem [shape: f32[1,256], index: 3, kind: input, shape index: {}]
  %s4 = inlined_call_operand.vmem [shape: f32[64,256], index: 4, kind: output, shape index: {}]
  %s5 = sld [smem:[#allocation0]]
  $region26: #{conv_block_forward.3} parent=0
    _
  %s7 = ssub.s32 1, %s5
  %s8 = scalar_select 0, %s7, %s5
  // Predicated region
  $region2: #{conv_block_forward.3} parent=0 // pred_check
    _
  $region3: #{conv_block_forward.3} parent=0 // pred_check_branch
    %10 = sbr.rel (0) target = $region5
  $region4: #{conv_block_forward.3} parent=0 // pred_region
    _
  $region5: #{conv_block_forward.3} parent=0 // pred_fallthru
    _
  // Predicated region
  $region6: #{conv_block_forward.3} parent=0 // pred_check
    _
  $region7: #{conv_block_forward.3} parent=0 // pred_check_branch
    %12 = sbr.rel (0) target = $region9
  $region8: #{conv_block_forward.3} parent=0 // pred_region
    _
  $region9: #{conv_block_forward.3} parent=0 // pred_fallthru
    _
  // Predicated region
  $region10: #{conv_block_forward.3} parent=0 // pred_check
    _
  $region11: #{conv_block_forward.3} parent=0 // pred_check_branch
    %14 = sbr.rel (0) target = $region13
  $region12: #{conv_block_forward.3} parent=0 // pred_region
    _
  $region13: #{conv_block_forward.3} parent=0 // pred_fallthru
    _
  // Predicated region
  $region14: #{conv_block_forward.3} parent=0 // pred_check
    _
  $region15: #{conv_block_forward.3} parent=0 // pred_check_branch
    %16 = sbr.rel (0) target = $region17
  $region16: #{conv_block_forward.3} parent=0 // pred_region
    _
  $region17: #{conv_block_forward.3} parent=0 // pred_fallthru
    _
  %v18 = vld [vmem:[%s0] sm:$0xff]
  %v19 = vld [vmem:[%s0 + $0x8] sm:$0xff]
  %v20 = vld [vmem:[%s0 + $0x10] sm:$0xf]
  %v21 = vld [vmem:[%s0 + $0x14] sm:$0xff]
  %v22 = vld [vmem:[%s0 + $0x1c] sm:$0xff]
  %v23 = vld [vmem:[%s0 + $0x24] sm:$0xf]
  %v24 = vld [vmem:[%s0 + $0x28] sm:$0xff]
  %v25 = vld [vmem:[%s0 + $0x30] sm:$0xff]
  %v26 = vld [vmem:[%s0 + $0x38] sm:$0xf]
  %v27 = vld [vmem:[%s0 + $0x3c] sm:$0xff]
  %v28 = vld [vmem:[%s0 + $0x44] sm:$0xff]
  %v29 = vld [vmem:[%s0 + $0x4c] sm:$0xf]
  %v30 = vld [vmem:[%s0 + $0x50] sm:$0xff]
  %v31 = vld [vmem:[%s0 + $0x58] sm:$0xff]
  %v32 = vld [vmem:[%s0 + $0x60] sm:$0xf]
  %v33 = vld [vmem:[%s0 + $0x64] sm:$0xff]
  %v34 = vld [vmem:[%s0 + $0x6c] sm:$0xff]
  %v35 = vld [vmem:[%s0 + $0x74] sm:$0xf]
  %v36 = vld [vmem:[%s0 + $0x78] sm:$0xff]
  %v37 = vld [vmem:[%s0 + $0x80] sm:$0xff]
  %v38 = vld [vmem:[%s0 + $0x88] sm:$0xf]
  %v39 = vld [vmem:[%s0 + $0x8c] sm:$0xff]
  %v40 = vld [vmem:[%s0 + $0x94] sm:$0xff]
  %v41 = vld [vmem:[%s0 + $0x9c] sm:$0xf]
  %v42 = vld [vmem:[%s1] sm:$0xff]
  %v43 = vld [vmem:[%s1 + $0x8] sm:$0xff]
  %v44 = vld [vmem:[%s1 + $0x10] sm:$0xff]
  %v45 = vld [vmem:[%s1 + $0x18] sm:$0xff]
  %v46 = vld [vmem:[%s1 + $0x20] sm:$0xff]
  %v47 = vld [vmem:[%s1 + $0x28] sm:$0xff]
  %v48 = vld [vmem:[%s1 + $0x30] sm:$0xff]
  %v49 = vld [vmem:[%s1 + $0x38] sm:$0xff]
  %v50 = vld [vmem:[%s1 + $0x40] sm:$0xff]
  %v51 = vld [vmem:[%s1 + $0x48] sm:$0xff]
  %v52 = vld [vmem:[%s1 + $0x50] sm:$0xff]
  %v53 = vld [vmem:[%s1 + $0x58] sm:$0xff]
  %v54 = vld [vmem:[%s1 + $0x60] sm:$0xff]
  %v55 = vld [vmem:[%s1 + $0x68] sm:$0xff]
  %v56 = vld [vmem:[%s1 + $0x70] sm:$0xff]
  %v57 = vld [vmem:[%s1 + $0x78] sm:$0xff]
  %v58 = vld [vmem:[%s1 + $0x80] sm:$0xff]
  %v59 = vld [vmem:[%s1 + $0x88] sm:$0xff]
  %v60 = vld [vmem:[%s1 + $0x90] sm:$0xff]
  %v61 = vld [vmem:[%s1 + $0x98] sm:$0xff]
  %v62 = vld [vmem:[%s1 + $0xa0] sm:$0xff]
  %v63 = vld [vmem:[%s1 + $0xa8] sm:$0xff]
  %v64 = vld [vmem:[%s1 + $0xb0] sm:$0xff]
  %v65 = vld [vmem:[%s1 + $0xb8] sm:$0xff]
  %v66 = vld [vmem:[%s1 + $0xc0] sm:$0xff]
  %v67 = vld [vmem:[%s1 + $0xc8] sm:$0xff]
  %v68 = vld [vmem:[%s1 + $0xd0] sm:$0xff]
  %v69 = vld [vmem:[%s1 + $0xd8] sm:$0xff]
  %v70 = vld [vmem:[%s1 + $0xe0] sm:$0xff]
  %v71 = vld [vmem:[%s1 + $0xe8] sm:$0xff]
  %v72 = vld [vmem:[%s1 + $0xf0] sm:$0xff]
  %v73 = vld [vmem:[%s1 + $0xf8] sm:$0xff]
  %v74 = vld [vmem:[%s1 + $0x100] sm:$0xff]
  %v75 = vld [vmem:[%s1 + $0x108] sm:$0xff]
  %v76 = vld [vmem:[%s1 + $0x110] sm:$0xff]
  %v77 = vld [vmem:[%s1 + $0x118] sm:$0xff]
  %v78 = vld [vmem:[%s1 + $0x120] sm:$0xff]
  %v79 = vld [vmem:[%s1 + $0x128] sm:$0xff]
  %v80 = vld [vmem:[%s1 + $0x130] sm:$0xff]
  %v81 = vld [vmem:[%s1 + $0x138] sm:$0xff]
  %v82 = vld [vmem:[%s1 + $0x140] sm:$0xff]
  %v83 = vld [vmem:[%s1 + $0x148] sm:$0xff]
  %v84 = vld [vmem:[%s1 + $0x150] sm:$0xff]
  %v85 = vld [vmem:[%s1 + $0x158] sm:$0xff]
  %v86 = vld [vmem:[%s1 + $0x160] sm:$0xff]
  %v87 = vld [vmem:[%s1 + $0x168] sm:$0xff]
  %v88 = vld [vmem:[%s1 + $0x170] sm:$0xff]
  %v89 = vld [vmem:[%s1 + $0x178] sm:$0xff]
  %v90 = vld [vmem:[%s1 + $0x180] sm:$0xff]
  %v91 = vld [vmem:[%s1 + $0x188] sm:$0xff]
  %v92 = vld [vmem:[%s1 + $0x190] sm:$0xff]
  %v93 = vld [vmem:[%s1 + $0x198] sm:$0xff]
  %v94 = vld [vmem:[%s1 + $0x1a0] sm:$0xff]
  %v95 = vld [vmem:[%s1 + $0x1a8] sm:$0xff]
  %v96 = vld [vmem:[%s1 + $0x1b0] sm:$0xff]
  %v97 = vld [vmem:[%s1 + $0x1b8] sm:$0xff]
  %v98 = vld [vmem:[%s1 + $0x1c0] sm:$0xff]
  %v99 = vld [vmem:[%s1 + $0x1c8] sm:$0xff]
  %v100 = vld [vmem:[%s1 + $0x1d0] sm:$0xff]
  %v101 = vld [vmem:[%s1 + $0x1d8] sm:$0xff]
  %v102 = vld [vmem:[%s1 + $0x1e0] sm:$0xff]
  %v103 = vld [vmem:[%s1 + $0x1e8] sm:$0xff]
  %v104 = vld [vmem:[%s1 + $0x1f0] sm:$0xff]
  %v105 = vld [vmem:[%s1 + $0x1f8] sm:$0xff]
  %v106 = vld [vmem:[%s1 + $0x200] sm:$0xff]
  %v107 = vld [vmem:[%s1 + $0x208] sm:$0xff]
  %v108 = vld [vmem:[%s1 + $0x210] sm:$0xff]
  %v109 = vld [vmem:[%s1 + $0x218] sm:$0xff]
  %v110 = vld [vmem:[%s1 + $0x220] sm:$0xff]
  %v111 = vld [vmem:[%s1 + $0x228] sm:$0xff]
  %v112 = vld [vmem:[%s1 + $0x230] sm:$0xff]
  %v113 = vld [vmem:[%s1 + $0x238] sm:$0xff]
  %v114 = vld [vmem:[%s1 + $0x240] sm:$0xff]
  %v115 = vld [vmem:[%s1 + $0x248] sm:$0xff]
  %v116 = vld [vmem:[%s1 + $0x250] sm:$0xff]
  %v117 = vld [vmem:[%s1 + $0x258] sm:$0xff]
  %v118 = vld [vmem:[%s1 + $0x260] sm:$0xff]
  %v119 = vld [vmem:[%s1 + $0x268] sm:$0xff]
  %v120 = vld [vmem:[%s1 + $0x270] sm:$0x77]
  %v145 = vunpack.c.l.b16 %v18
  %v146 = vunpack.c.h.b16 %v18
  %v147 = vunpack.c.l.b16 %v19
  %v148 = vunpack.c.h.b16 %v19
  %v149 = vunpack.c.l.b16 %v20
  %v150 = vunpack.c.l.b16 %v21
  %v151 = vunpack.c.h.b16 %v21
  %v152 = vunpack.c.l.b16 %v22
  %v153 = vunpack.c.h.b16 %v22
  %v154 = vunpack.c.l.b16 %v23
  %v155 = vunpack.c.l.b16 %v24
  %v156 = vunpack.c.h.b16 %v24
  %v157 = vunpack.c.l.b16 %v25
  %v158 = vunpack.c.h.b16 %v25
  %v159 = vunpack.c.l.b16 %v26
  %v160 = vunpack.c.l.b16 %v27
  %v161 = vunpack.c.h.b16 %v27
  %v162 = vunpack.c.l.b16 %v28
  %v163 = vunpack.c.h.b16 %v28
  %v164 = vunpack.c.l.b16 %v29
  %v165 = vunpack.c.l.b16 %v30
  %v166 = vunpack.c.h.b16 %v30
  %v167 = vunpack.c.l.b16 %v31
  %v168 = vunpack.c.h.b16 %v31
  %v169 = vunpack.c.l.b16 %v32
  %v170 = vunpack.c.l.b16 %v33
  %v171 = vunpack.c.h.b16 %v33
  %v172 = vunpack.c.l.b16 %v34
  %v173 = vunpack.c.h.b16 %v34
  %v174 = vunpack.c.l.b16 %v35
  %v175 = vunpack.c.l.b16 %v36
  %v176 = vunpack.c.h.b16 %v36
  %v177 = vunpack.c.l.b16 %v37
  %v178 = vunpack.c.h.b16 %v37
  %v179 = vunpack.c.l.b16 %v38
  %v180 = vunpack.c.l.b16 %v39
  %v181 = vunpack.c.h.b16 %v39
  %v182 = vunpack.c.l.b16 %v40
  %v183 = vunpack.c.h.b16 %v40
  %v184 = vunpack.c.l.b16 %v41
  %v185 = vpack.c.b16 %v150, %v145
  %v186 = vpack.c.b16 %v151, %v146
  %v187 = vpack.c.b16 %v152, %v147
  %v188 = vpack.c.b16 %v153, %v148
  %v189 = vpack.c.b16 %v154, %v149
  %v190 = vpack.c.b16 %v160, %v155
  %v191 = vpack.c.b16 %v161, %v156
  %v192 = vpack.c.b16 %v162, %v157
  %v193 = vpack.c.b16 %v163, %v158
  %v194 = vpack.c.b16 %v164, %v159
  %v195 = vpack.c.b16 %v170, %v165
  %v196 = vpack.c.b16 %v171, %v166
  %v197 = vpack.c.b16 %v172, %v167
  %v198 = vpack.c.b16 %v173, %v168
  %v199 = vpack.c.b16 %v174, %v169
  %v200 = vpack.c.b16 %v180, %v175
  %v201 = vpack.c.b16 %v181, %v176
  %v202 = vpack.c.b16 %v182, %v177
  %v203 = vpack.c.b16 %v183, %v178
  %v204 = vpack.c.b16 %v184, %v179
  %v300 = vunpack.c.l.b16 %v42
  %v301 = vunpack.c.h.b16 %v42
  %v302 = vunpack.c.l.b16 %v43
  %v303 = vunpack.c.h.b16 %v43
  %v304 = vunpack.c.l.b16 %v44
  %v305 = vunpack.c.h.b16 %v44
  %v306 = vunpack.c.l.b16 %v45
  %v307 = vunpack.c.h.b16 %v45
  %v308 = vunpack.c.l.b16 %v46
  %v309 = vunpack.c.h.b16 %v46
  %v310 = vunpack.c.l.b16 %v47
  %v311 = vunpack.c.h.b16 %v47
  %v312 = vunpack.c.l.b16 %v48
  %v313 = vunpack.c.h.b16 %v48
  %v314 = vunpack.c.l.b16 %v49
  %v315 = vunpack.c.h.b16 %v49
  %v316 = vunpack.c.l.b16 %v50
  %v317 = vunpack.c.h.b16 %v50
  %v318 = vunpack.c.l.b16 %v51
  %v319 = vunpack.c.h.b16 %v51
  %v320 = vunpack.c.l.b16 %v52
  %v321 = vunpack.c.h.b16 %v52
  %v322 = vunpack.c.l.b16 %v53
  %v323 = vunpack.c.h.b16 %v53
  %v324 = vunpack.c.l.b16 %v54
  %v325 = vunpack.c.h.b16 %v54
  %v326 = vunpack.c.l.b16 %v55
  %v327 = vunpack.c.h.b16 %v55
  %v328 = vunpack.c.l.b16 %v56
  %v329 = vunpack.c.h.b16 %v56
  %v330 = vunpack.c.l.b16 %v57
  %v331 = vunpack.c.h.b16 %v57
  %v332 = vunpack.c.l.b16 %v58
  %v333 = vunpack.c.h.b16 %v58
  %v334 = vunpack.c.l.b16 %v59
  %v335 = vunpack.c.h.b16 %v59
  %v336 = vunpack.c.l.b16 %v60
  %v337 = vunpack.c.h.b16 %v60
  %v338 = vunpack.c.l.b16 %v61
  %v339 = vunpack.c.h.b16 %v61
  %v340 = vunpack.c.l.b16 %v62
  %v341 = vunpack.c.h.b16 %v62
  %v342 = vunpack.c.l.b16 %v63
  %v343 = vunpack.c.h.b16 %v63
  %v344 = vunpack.c.l.b16 %v64
  %v345 = vunpack.c.h.b16 %v64
  %v346 = vunpack.c.l.b16 %v65
  %v347 = vunpack.c.h.b16 %v65
  %v348 = vunpack.c.l.b16 %v66
  %v349 = vunpack.c.h.b16 %v66
  %v350 = vunpack.c.l.b16 %v67
  %v351 = vunpack.c.h.b16 %v67
  %v352 = vunpack.c.l.b16 %v68
  %v353 = vunpack.c.h.b16 %v68
  %v354 = vunpack.c.l.b16 %v69
  %v355 = vunpack.c.h.b16 %v69
  %v356 = vunpack.c.l.b16 %v70
  %v357 = vunpack.c.h.b16 %v70
  %v358 = vunpack.c.l.b16 %v71
  %v359 = vunpack.c.h.b16 %v71
  %v360 = vunpack.c.l.b16 %v72
  %v361 = vunpack.c.h.b16 %v72
  %v362 = vunpack.c.l.b16 %v73
  %v363 = vunpack.c.h.b16 %v73
  %v364 = vunpack.c.l.b16 %v74
  %v365 = vunpack.c.h.b16 %v74
  %v366 = vunpack.c.l.b16 %v75
  %v367 = vunpack.c.h.b16 %v75
  %v368 = vunpack.c.l.b16 %v76
  %v369 = vunpack.c.h.b16 %v76
  %v370 = vunpack.c.l.b16 %v77
  %v371 = vunpack.c.h.b16 %v77
  %v372 = vunpack.c.l.b16 %v78
  %v373 = vunpack.c.h.b16 %v78
  %v374 = vunpack.c.l.b16 %v79
  %v375 = vunpack.c.h.b16 %v79
  %v376 = vunpack.c.l.b16 %v80
  %v377 = vunpack.c.h.b16 %v80
  %v378 = vunpack.c.l.b16 %v81
  %v379 = vunpack.c.h.b16 %v81
  %v380 = vunpack.c.l.b16 %v82
  %v381 = vunpack.c.h.b16 %v82
  %v382 = vunpack.c.l.b16 %v83
  %v383 = vunpack.c.h.b16 %v83
  %v384 = vunpack.c.l.b16 %v84
  %v385 = vunpack.c.h.b16 %v84
  %v386 = vunpack.c.l.b16 %v85
  %v387 = vunpack.c.h.b16 %v85
  %v388 = vunpack.c.l.b16 %v86
  %v389 = vunpack.c.h.b16 %v86
  %v390 = vunpack.c.l.b16 %v87
  %v391 = vunpack.c.h.b16 %v87
  %v392 = vunpack.c.l.b16 %v88
  %v393 = vunpack.c.h.b16 %v88
  %v394 = vunpack.c.l.b16 %v89
  %v395 = vunpack.c.h.b16 %v89
  %v396 = vunpack.c.l.b16 %v90
  %v397 = vunpack.c.h.b16 %v90
  %v398 = vunpack.c.l.b16 %v91
  %v399 = vunpack.c.h.b16 %v91
  %v400 = vunpack.c.l.b16 %v92
  %v401 = vunpack.c.h.b16 %v92
  %v402 = vunpack.c.l.b16 %v93
  %v403 = vunpack.c.h.b16 %v93
  %v404 = vunpack.c.l.b16 %v94
  %v405 = vunpack.c.h.b16 %v94
  %v406 = vunpack.c.l.b16 %v95
  %v407 = vunpack.c.h.b16 %v95
  %v408 = vunpack.c.l.b16 %v96
  %v409 = vunpack.c.h.b16 %v96
  %v410 = vunpack.c.l.b16 %v97
  %v411 = vunpack.c.h.b16 %v97
  %v412 = vunpack.c.l.b16 %v98
  %v413 = vunpack.c.h.b16 %v98
  %v414 = vunpack.c.l.b16 %v99
  %v415 = vunpack.c.h.b16 %v99
  %v416 = vunpack.c.l.b16 %v100
  %v417 = vunpack.c.h.b16 %v100
  %v418 = vunpack.c.l.b16 %v101
  %v419 = vunpack.c.h.b16 %v101
  %v420 = vunpack.c.l.b16 %v102
  %v421 = vunpack.c.h.b16 %v102
  %v422 = vunpack.c.l.b16 %v103
  %v423 = vunpack.c.h.b16 %v103
  %v424 = vunpack.c.l.b16 %v104
  %v425 = vunpack.c.h.b16 %v104
  %v426 = vunpack.c.l.b16 %v105
  %v427 = vunpack.c.h.b16 %v105
  %v428 = vunpack.c.l.b16 %v106
  %v429 = vunpack.c.h.b16 %v106
  %v430 = vunpack.c.l.b16 %v107
  %v431 = vunpack.c.h.b16 %v107
  %v432 = vunpack.c.l.b16 %v108
  %v433 = vunpack.c.h.b16 %v108
  %v434 = vunpack.c.l.b16 %v109
  %v435 = vunpack.c.h.b16 %v109
  %v436 = vunpack.c.l.b16 %v110
  %v437 = vunpack.c.h.b16 %v110
  %v438 = vunpack.c.l.b16 %v111
  %v439 = vunpack.c.h.b16 %v111
  %v440 = vunpack.c.l.b16 %v112
  %v441 = vunpack.c.h.b16 %v112
  %v442 = vunpack.c.l.b16 %v113
  %v443 = vunpack.c.h.b16 %v113
  %v444 = vunpack.c.l.b16 %v114
  %v445 = vunpack.c.h.b16 %v114
  %v446 = vunpack.c.l.b16 %v115
  %v447 = vunpack.c.h.b16 %v115
  %v448 = vunpack.c.l.b16 %v116
  %v449 = vunpack.c.h.b16 %v116
  %v450 = vunpack.c.l.b16 %v117
  %v451 = vunpack.c.h.b16 %v117
  %v452 = vunpack.c.l.b16 %v118
  %v453 = vunpack.c.h.b16 %v118
  %v454 = vunpack.c.l.b16 %v119
  %v455 = vunpack.c.h.b16 %v119
  %v456 = vunpack.c.l.b16 %v120
  %v457 = vunpack.c.h.b16 %v120
  %v458 = vpack.c.b16 %v302, %v300
  %v459 = vpack.c.b16 %v303, %v301
  %v460 = vpack.c.b16 %v306, %v304
  %v461 = vpack.c.b16 %v307, %v305
  %v462 = vpack.c.b16 %v310, %v308
  %v463 = vpack.c.b16 %v311, %v309
  %v464 = vpack.c.b16 %v314, %v312
  %v465 = vpack.c.b16 %v315, %v313
  %v466 = vpack.c.b16 %v318, %v316
  %v467 = vpack.c.b16 %v319, %v317
  %v468 = vpack.c.b16 %v322, %v320
  %v469 = vpack.c.b16 %v323, %v321
  %v470 = vpack.c.b16 %v326, %v324
  %v471 = vpack.c.b16 %v327, %v325
  %v472 = vpack.c.b16 %v330, %v328
  %v473 = vpack.c.b16 %v331, %v329
  %v474 = vpack.c.b16 %v334, %v332
  %v475 = vpack.c.b16 %v335, %v333
  %v476 = vpack.c.b16 %v338, %v336
  %v477 = vpack.c.b16 %v339, %v337
  %v478 = vpack.c.b16 %v342, %v340
  %v479 = vpack.c.b16 %v343, %v341
  %v480 = vpack.c.b16 %v346, %v344
  %v481 = vpack.c.b16 %v347, %v345
  %v482 = vpack.c.b16 %v350, %v348
  %v483 = vpack.c.b16 %v351, %v349
  %v484 = vpack.c.b16 %v354, %v352
  %v485 = vpack.c.b16 %v355, %v353
  %v486 = vpack.c.b16 %v358, %v356
  %v487 = vpack.c.b16 %v359, %v357
  %v488 = vpack.c.b16 %v362, %v360
  %v489 = vpack.c.b16 %v363, %v361
  %v490 = vpack.c.b16 %v366, %v364
  %v491 = vpack.c.b16 %v367, %v365
  %v492 = vpack.c.b16 %v370, %v368
  %v493 = vpack.c.b16 %v371, %v369
  %v494 = vpack.c.b16 %v374, %v372
  %v495 = vpack.c.b16 %v375, %v373
  %v496 = vpack.c.b16 %v378, %v376
  %v497 = vpack.c.b16 %v379, %v377
  %v498 = vpack.c.b16 %v382, %v380
  %v499 = vpack.c.b16 %v383, %v381
  %v500 = vpack.c.b16 %v386, %v384
  %v501 = vpack.c.b16 %v387, %v385
  %v502 = vpack.c.b16 %v390, %v388
  %v503 = vpack.c.b16 %v391, %v389
  %v504 = vpack.c.b16 %v394, %v392
  %v505 = vpack.c.b16 %v395, %v393
  %v506 = vpack.c.b16 %v398, %v396
  %v507 = vpack.c.b16 %v399, %v397
  %v508 = vpack.c.b16 %v402, %v400
  %v509 = vpack.c.b16 %v403, %v401
  %v510 = vpack.c.b16 %v406, %v404
  %v511 = vpack.c.b16 %v407, %v405
  %v512 = vpack.c.b16 %v410, %v408
  %v513 = vpack.c.b16 %v411, %v409
  %v514 = vpack.c.b16 %v414, %v412
  %v515 = vpack.c.b16 %v415, %v413
  %v516 = vpack.c.b16 %v418, %v416
  %v517 = vpack.c.b16 %v419, %v417
  %v518 = vpack.c.b16 %v422, %v420
  %v519 = vpack.c.b16 %v423, %v421
  %v520 = vpack.c.b16 %v426, %v424
  %v521 = vpack.c.b16 %v427, %v425
  %v522 = vpack.c.b16 %v430, %v428
  %v523 = vpack.c.b16 %v431, %v429
  %v524 = vpack.c.b16 %v434, %v432
  %v525 = vpack.c.b16 %v435, %v433
  %v526 = vpack.c.b16 %v438, %v436
  %v527 = vpack.c.b16 %v439, %v437
  %v528 = vpack.c.b16 %v442, %v440
  %v529 = vpack.c.b16 %v443, %v441
  %v530 = vpack.c.b16 %v446, %v444
  %v531 = vpack.c.b16 %v447, %v445
  %v532 = vpack.c.b16 %v450, %v448
  %v533 = vpack.c.b16 %v451, %v449
  %v534 = vpack.c.b16 %v454, %v452
  %v535 = vpack.c.b16 %v455, %v453
  %v536 = vpack.c.b16 %v456, %v456
  %v537 = vpack.c.b16 %v457, %v457
  %vm616 = vcmask 965632
  %v618 = vsel %vm616, %v189, 0
  %v621 = vsel %vm616, %v194, 0
  %v624 = vsel %vm616, %v199, 0
  %v627 = vsel %vm616, %v204, 0
  %vm629 = vcmask 1042432
  %v631 = vsel %vm629, %v536, 0
  %v634 = vsel %vm629, %v537, 0
  %636 = vmatprep.subr.bf16.mxu0 %v459
  %637 = vmatpush1.bf16.msra.mxu0 %v458
  %638 = vmatprep.subr.bf16.mxu0 %v461
  %639 = vmatpush1.bf16.msra.mxu0 %v460
  %640 = vmatprep.subr.bf16.mxu0 %v463
  %641 = vmatpush1.bf16.msra.mxu0 %v462
  %642 = vmatprep.subr.bf16.mxu0 %v465
  %643 = vmatpush1.bf16.msra.mxu0 %v464
  %644 = vmatprep.subr.bf16.mxu0 %v467
  %645 = vmatpush1.bf16.msra.mxu0 %v466
  %646 = vmatprep.subr.bf16.mxu0 %v469
  %647 = vmatpush1.bf16.msra.mxu0 %v468
  %648 = vmatprep.subr.bf16.mxu0 %v471
  %649 = vmatpush1.bf16.msra.mxu0 %v470
  %650 = vmatprep.subr.bf16.mxu0 %v473
  %651 = vmatpush1.bf16.msra.mxu0 %v472
  %652 = vmatprep.subr.bf16.mxu0 %v475
  %653 = vmatpush1.bf16.msra.mxu0 %v474
  %654 = vmatprep.subr.bf16.mxu0 %v477
  %655 = vmatpush1.bf16.msra.mxu0 %v476
  %656 = vmatprep.subr.bf16.mxu0 %v479
  %657 = vmatpush1.bf16.msra.mxu0 %v478
  %658 = vmatprep.subr.bf16.mxu0 %v481
  %659 = vmatpush1.bf16.msra.mxu0 %v480
  %660 = vmatprep.subr.bf16.mxu0 %v483
  %661 = vmatpush1.bf16.msra.mxu0 %v482
  %662 = vmatprep.subr.bf16.mxu0 %v485
  %663 = vmatpush1.bf16.msra.mxu0 %v484
  %664 = vmatprep.subr.bf16.mxu0 %v487
  %665 = vmatpush1.bf16.msra.mxu0 %v486
  %666 = vmatprep.subr.bf16.mxu0 %v489
  %667 = vmatpush1.bf16.msra.mxu0 %v488
  %668 = vmatprep.mubr.bf16.mxu0 %v186
  %669 = vmatmul.mubr.bf16.gmra.mrb[0].mxu0 %v185
  %v670 = vpop.f32.mrb[0].mxu0
  %v671 = vadd.f32 0.0, %v670
  %v672 = vpop.f32.mrb[0].mxu0
  %v673 = vadd.f32 0.0, %v672
  %v674 = vpop.f32.mrb[0].mxu0
  %v675 = vadd.f32 0.0, %v674
  %v676 = vpop.f32.mrb[0].mxu0
  %v677 = vadd.f32 0.0, %v676
  %678 = vmatprep.mubr.bf16.mxu0 %v191
  %679 = vmatmul.mubr.bf16.gmra.mrb[0].mxu0 %v190
  %v680 = vpop.f32.mrb[0].mxu0
  %v681 = vadd.f32 0.0, %v680
  %v682 = vpop.f32.mrb[0].mxu0
  %v683 = vadd.f32 0.0, %v682
  %v684 = vpop.f32.mrb[0].mxu0
  %v685 = vadd.f32 0.0, %v684
  %v686 = vpop.f32.mrb[0].mxu0
  %v687 = vadd.f32 0.0, %v686
  %688 = vmatprep.mubr.bf16.mxu0 %v196
  %689 = vmatmul.mubr.bf16.gmra.mrb[0].mxu0 %v195
  %v690 = vpop.f32.mrb[0].mxu0
  %v691 = vadd.f32 0.0, %v690
  %v692 = vpop.f32.mrb[0].mxu0
  %v693 = vadd.f32 0.0, %v692
  %v694 = vpop.f32.mrb[0].mxu0
  %v695 = vadd.f32 0.0, %v694
  %v696 = vpop.f32.mrb[0].mxu0
  %v697 = vadd.f32 0.0, %v696
  %698 = vmatprep.mubr.bf16.mxu0 %v201
  %699 = vmatmul.mubr.bf16.gmra.mrb[0].mxu0 %v200
  %v700 = vpop.f32.mrb[0].mxu0
  %v701 = vadd.f32 0.0, %v700
  %v702 = vpop.f32.mrb[0].mxu0
  %v703 = vadd.f32 0.0, %v702
  %v704 = vpop.f32.mrb[0].mxu0
  %v705 = vadd.f32 0.0, %v704
  %v706 = vpop.f32.mrb[0].mxu0
  %v707 = vadd.f32 0.0, %v706
  %708 = vdwg.mxu0
  %709 = vmatprep.subr.bf16.mxu0 %v491
  %710 = vmatpush1.bf16.msra.mxu0 %v490
  %711 = vmatprep.subr.bf16.mxu0 %v493
  %712 = vmatpush1.bf16.msra.mxu0 %v492
  %713 = vmatprep.subr.bf16.mxu0 %v495
  %714 = vmatpush1.bf16.msra.mxu0 %v494
  %715 = vmatprep.subr.bf16.mxu0 %v497
  %716 = vmatpush1.bf16.msra.mxu0 %v496
  %717 = vmatprep.subr.bf16.mxu0 %v499
  %718 = vmatpush1.bf16.msra.mxu0 %v498
  %719 = vmatprep.subr.bf16.mxu0 %v501
  %720 = vmatpush1.bf16.msra.mxu0 %v500
  %721 = vmatprep.subr.bf16.mxu0 %v503
  %722 = vmatpush1.bf16.msra.mxu0 %v502
  %723 = vmatprep.subr.bf16.mxu0 %v505
  %724 = vmatpush1.bf16.msra.mxu0 %v504
  %725 = vmatprep.subr.bf16.mxu0 %v507
  %726 = vmatpush1.bf16.msra.mxu0 %v506
  %727 = vmatprep.subr.bf16.mxu0 %v509
  %728 = vmatpush1.bf16.msra.mxu0 %v508
  %729 = vmatprep.subr.bf16.mxu0 %v511
  %730 = vmatpush1.bf16.msra.mxu0 %v510
  %731 = vmatprep.subr.bf16.mxu0 %v513
  %732 = vmatpush1.bf16.msra.mxu0 %v512
  %733 = vmatprep.subr.bf16.mxu0 %v515
  %734 = vmatpush1.bf16.msra.mxu0 %v514
  %735 = vmatprep.subr.bf16.mxu0 %v517
  %736 = vmatpush1.bf16.msra.mxu0 %v516
  %737 = vmatprep.subr.bf16.mxu0 %v519
  %738 = vmatpush1.bf16.msra.mxu0 %v518
  %739 = vmatprep.subr.bf16.mxu0 %v521
  %740 = vmatpush1.bf16.msra.mxu0 %v520
  %741 = vmatprep.mubr.bf16.mxu0 %v188
  %742 = vmatmul.mubr.bf16.gmra.mrb[0].mxu0 %v187
  %v743 = vpop.f32.mrb[0].mxu0
  %v744 = vadd.f32 %v671, %v743
  %v745 = vpop.f32.mrb[0].mxu0
  %v746 = vadd.f32 %v673, %v745
  %v747 = vpop.f32.mrb[0].mxu0
  %v748 = vadd.f32 %v675, %v747
  %v749 = vpop.f32.mrb[0].mxu0
  %v750 = vadd.f32 %v677, %v749
  %751 = vmatprep.mubr.bf16.mxu0 %v193
  %752 = vmatmul.mubr.bf16.gmra.mrb[0].mxu0 %v192
  %v753 = vpop.f32.mrb[0].mxu0
  %v754 = vadd.f32 %v681, %v753
  %v755 = vpop.f32.mrb[0].mxu0
  %v756 = vadd.f32 %v683, %v755
  %v757 = vpop.f32.mrb[0].mxu0
  %v758 = vadd.f32 %v685, %v757
  %v759 = vpop.f32.mrb[0].mxu0
  %v760 = vadd.f32 %v687, %v759
  %761 = vmatprep.mubr.bf16.mxu0 %v198
  %762 = vmatmul.mubr.bf16.gmra.mrb[0].mxu0 %v197
  %v763 = vpop.f32.mrb[0].mxu0
  %v764 = vadd.f32 %v691, %v763
  %v765 = vpop.f32.mrb[0].mxu0
  %v766 = vadd.f32 %v693, %v765
  %v767 = vpop.f32.mrb[0].mxu0
  %v768 = vadd.f32 %v695, %v767
  %v769 = vpop.f32.mrb[0].mxu0
  %v770 = vadd.f32 %v697, %v769
  %771 = vmatprep.mubr.bf16.mxu0 %v203
  %772 = vmatmul.mubr.bf16.gmra.mrb[0].mxu0 %v202
  %v773 = vpop.f32.mrb[0].mxu0
  %v774 = vadd.f32 %v701, %v773
  %v775 = vpop.f32.mrb[0].mxu0
  %v776 = vadd.f32 %v703, %v775
  %v777 = vpop.f32.mrb[0].mxu0
  %v778 = vadd.f32 %v705, %v777
  %v779 = vpop.f32.mrb[0].mxu0
  %v780 = vadd.f32 %v707, %v779
  %781 = vdwg.mxu0
  %782 = vmatprep.subr.bf16.mxu0 %v523
  %783 = vmatpush1.bf16.msra.mxu0 %v522
  %784 = vmatprep.subr.bf16.mxu0 %v525
  %785 = vmatpush1.bf16.msra.mxu0 %v524
  %786 = vmatprep.subr.bf16.mxu0 %v527
  %787 = vmatpush1.bf16.msra.mxu0 %v526
  %788 = vmatprep.subr.bf16.mxu0 %v529
  %789 = vmatpush1.bf16.msra.mxu0 %v528
  %790 = vmatprep.subr.bf16.mxu0 %v531
  %791 = vmatpush1.bf16.msra.mxu0 %v530
  %792 = vmatprep.subr.bf16.mxu0 %v533
  %793 = vmatpush1.bf16.msra.mxu0 %v532
  %794 = vmatprep.subr.bf16.mxu0 %v535
  %795 = vmatpush1.bf16.msra.mxu0 %v534
  %796 = vmatprep.subr.bf16.mxu0 %v634
  %797 = vmatpush1.bf16.msra.mxu0 %v631
  %798 = vmatprep.subr.bf16.mxu0 0
  %799 = vmatpush1.bf16.msra.mxu0 0
  %800 = vmatprep.subr.bf16.mxu0 0
  %801 = vmatpush1.bf16.msra.mxu0 0
  %802 = vmatprep.subr.bf16.mxu0 0
  %803 = vmatpush1.bf16.msra.mxu0 0
  %804 = vmatprep.subr.bf16.mxu0 0
  %805 = vmatpush1.bf16.msra.mxu0 0
  %806 = vmatprep.subr.bf16.mxu0 0
  %807 = vmatpush1.bf16.msra.mxu0 0
  %808 = vmatprep.subr.bf16.mxu0 0
  %809 = vmatpush1.bf16.msra.mxu0 0
  %810 = vmatprep.subr.bf16.mxu0 0
  %811 = vmatpush1.bf16.msra.mxu0 0
  %812 = vmatprep.subr.bf16.mxu0 0
  %813 = vmatpush1.bf16.msra.mxu0 0
  %814 = vmatprep.mubr.bf16.mxu0 0
  %815 = vmatmul.mubr.bf16.gmra.mrb[0].mxu0 %v618
  %v816 = vpop.f32.mrb[0].mxu0
  %v817 = vadd.f32 %v744, %v816
  %v818 = vpop.f32.mrb[0].mxu0
  %v819 = vadd.f32 %v746, %v818
  %v820 = vpop.f32.mrb[0].mxu0
  %v821 = vadd.f32 %v748, %v820
  %v822 = vpop.f32.mrb[0].mxu0
  %v823 = vadd.f32 %v750, %v822
  %824 = vmatprep.mubr.bf16.mxu0 0
  %825 = vmatmul.mubr.bf16.gmra.mrb[0].mxu0 %v621
  %v826 = vpop.f32.mrb[0].mxu0
  %v827 = vadd.f32 %v754, %v826
  %v828 = vpop.f32.mrb[0].mxu0
  %v829 = vadd.f32 %v756, %v828
  %v830 = vpop.f32.mrb[0].mxu0
  %v831 = vadd.f32 %v758, %v830
  %v832 = vpop.f32.mrb[0].mxu0
  %v833 = vadd.f32 %v760, %v832
  %834 = vmatprep.mubr.bf16.mxu0 0
  %835 = vmatmul.mubr.bf16.gmra.mrb[0].mxu0 %v624
  %v836 = vpop.f32.mrb[0].mxu0
  %v837 = vadd.f32 %v764, %v836
  %v838 = vpop.f32.mrb[0].mxu0
  %v839 = vadd.f32 %v766, %v838
  %v840 = vpop.f32.mrb[0].mxu0
  %v841 = vadd.f32 %v768, %v840
  %v842 = vpop.f32.mrb[0].mxu0
  %v843 = vadd.f32 %v770, %v842
  %844 = vmatprep.mubr.bf16.mxu0 0
  %845 = vmatmul.mubr.bf16.gmra.mrb[0].mxu0 %v627
  %v846 = vpop.f32.mrb[0].mxu0
  %v847 = vadd.f32 %v774, %v846
  %v848 = vpop.f32.mrb[0].mxu0
  %v849 = vadd.f32 %v776, %v848
  %v850 = vpop.f32.mrb[0].mxu0
  %v851 = vadd.f32 %v778, %v850
  %v852 = vpop.f32.mrb[0].mxu0
  %v853 = vadd.f32 %v780, %v852
  %854 = vdwg.mxu0
  %v855 = vld [vmem:[%s2] sm:$0x3]
  %v857 = vlaneseq
  %v858 = vshrl.u32 %v857, 7
  %v859 = vsub.s32 0, %v858
  %v860 = vrot.slane %v855, %v859
  %v861 = vlaneseq
  %v862 = vshrl.u32 %v861, 7
  %v863 = vsub.s32 1, %v862
  %v864 = vrot.slane %v855, %v863
  %v867 = vmul.f32 %v817, %v860
  %v868 = vmul.f32 %v819, %v864
  %v869 = vmul.f32 %v821, %v860
  %v870 = vmul.f32 %v823, %v864
  %v871 = vmul.f32 %v827, %v860
  %v872 = vmul.f32 %v829, %v864
  %v873 = vmul.f32 %v831, %v860
  %v874 = vmul.f32 %v833, %v864
  %v875 = vmul.f32 %v837, %v860
  %v876 = vmul.f32 %v839, %v864
  %v877 = vmul.f32 %v841, %v860
  %v878 = vmul.f32 %v843, %v864
  %v879 = vmul.f32 %v847, %v860
  %v880 = vmul.f32 %v849, %v864
  %v881 = vmul.f32 %v851, %v860
  %v882 = vmul.f32 %v853, %v864
  %v883 = vld [vmem:[%s3] sm:$0x3]
  %v885 = vlaneseq
  %v886 = vshrl.u32 %v885, 7
  %v887 = vsub.s32 0, %v886
  %v888 = vrot.slane %v883, %v887
  %v889 = vlaneseq
  %v890 = vshrl.u32 %v889, 7
  %v891 = vsub.s32 1, %v890
  %v892 = vrot.slane %v883, %v891
  %v895 = vadd.f32 %v867, %v888
  %v896 = vadd.f32 %v868, %v892
  %v897 = vadd.f32 %v869, %v888
  %v898 = vadd.f32 %v870, %v892
  %v899 = vadd.f32 %v871, %v888
  %v900 = vadd.f32 %v872, %v892
  %v901 = vadd.f32 %v873, %v888
  %v902 = vadd.f32 %v874, %v892
  %v903 = vadd.f32 %v875, %v888
  %v904 = vadd.f32 %v876, %v892
  %v905 = vadd.f32 %v877, %v888
  %v906 = vadd.f32 %v878, %v892
  %v907 = vadd.f32 %v879, %v888
  %v908 = vadd.f32 %v880, %v892
  %v909 = vadd.f32 %v881, %v888
  %v910 = vadd.f32 %v882, %v892
  %v911 = vmax.f32 %v895, 0.0
  %v912 = vmax.f32 %v896, 0.0
  %v913 = vmax.f32 %v897, 0.0
  %v914 = vmax.f32 %v898, 0.0
  %v915 = vmax.f32 %v899, 0.0
  %v916 = vmax.f32 %v900, 0.0
  %v917 = vmax.f32 %v901, 0.0
  %v918 = vmax.f32 %v902, 0.0
  %v919 = vmax.f32 %v903, 0.0
  %v920 = vmax.f32 %v904, 0.0
  %v921 = vmax.f32 %v905, 0.0
  %v922 = vmax.f32 %v906, 0.0
  %v923 = vmax.f32 %v907, 0.0
  %v924 = vmax.f32 %v908, 0.0
  %v925 = vmax.f32 %v909, 0.0
  %v926 = vmax.f32 %v910, 0.0
  %927 = vst [vmem:[%s4] sm:$0xff] %v911
  %928 = vst [vmem:[%s4 + $0x8] sm:$0xff] %v912
  %929 = vst [vmem:[%s4 + $0x10] sm:$0xff] %v913
  %930 = vst [vmem:[%s4 + $0x18] sm:$0xff] %v914
  %931 = vst [vmem:[%s4 + $0x20] sm:$0xff] %v915
  %932 = vst [vmem:[%s4 + $0x28] sm:$0xff] %v916
  %933 = vst [vmem:[%s4 + $0x30] sm:$0xff] %v917
  %934 = vst [vmem:[%s4 + $0x38] sm:$0xff] %v918
  %935 = vst [vmem:[%s4 + $0x40] sm:$0xff] %v919
  %936 = vst [vmem:[%s4 + $0x48] sm:$0xff] %v920
  %937 = vst [vmem:[%s4 + $0x50] sm:$0xff] %v921
  %938 = vst [vmem:[%s4 + $0x58] sm:$0xff] %v922
  %939 = vst [vmem:[%s4 + $0x60] sm:$0xff] %v923
  %940 = vst [vmem:[%s4 + $0x68] sm:$0xff] %v924
  %941 = vst [vmem:[%s4 + $0x70] sm:$0xff] %v925
  %942 = vst [vmem:[%s4 + $0x78] sm:$0xff] %v926
  // Predicated region
  $region18: #{conv_block_forward.3} parent=0 // pred_check
    _
  $region19: #{conv_block_forward.3} parent=0 // pred_check_branch
    %944 = sbr.rel (0) target = $region21
  $region20: #{conv_block_forward.3} parent=0 // pred_region
    _
  $region21: #{conv_block_forward.3} parent=0 // pred_fallthru
    _
  // Predicated region
  $region22: #{conv_block_forward.3} parent=0 // pred_check
    _
  $region23: #{conv_block_forward.3} parent=0 // pred_check_branch
    %946 = sbr.rel (0) target = $region25
  $region24: #{conv_block_forward.3} parent=0 // pred_region
    _
  $region25: #{conv_block_forward.3} parent=0 // pred_fallthru
    _

</llo_original>
